<compile_context>
chip_gen: v7x
topology: tpu7x:2x2x1
jax: 0.10.0
libtpu: 0.0.40
codegen_flags: <defaults>
</compile_context>

<pallas_src>
import functools

import jax
import jax.numpy as jnp
from jax import lax
from jax.experimental import pallas as pl
from jax.experimental.pallas import tpu as pltpu


def _round_up(v, m):
    return (v + m - 1) // m * m


def _residual_block_kernel(x_ref, w1_ref, b1_ref, w2_ref, b2_ref, o_ref, xbuf,
                           *, C, H, W, Nb, PAD):
    # Block shapes:
    #   x_ref : (Nb, C, H*W)   f32 input images, channels-first, spatial flattened
    #   w*_ref: (Cp, 9*Cp)     f32 weights, column index = (ki*3 + kj)*Cp + ci (zero-padded)
    #   b*_ref: (Cp, 1)        f32 biases (zero-padded)
    #   o_ref : (Nb, C, H*W)   f32 output
    #   xbuf  : (Nb, Cp, SEG)  f32 scratch; per-image flat zero-padded slab whose interior
    #           starts at lane offset PAD (multiple of 128); SEG % 128 == 0.
    Cp = xbuf.shape[1]
    HW = H * W
    BASE = PAD - (W + 1)   # flat offset of tap (ki=0, kj=0)

    # Zero the scratch every step: pad strips must be zero, and on multi-TensorCore chips
    # each core starts with its own uninitialized copy.  (Nb*Cp*SEG f32 is a handful of
    # vreg-wide aligned stores -- negligible.)
    xbuf[...] = jnp.zeros_like(xbuf)

    # Full-shape wrap masks, computed once (no per-tap re-broadcast).
    col = lax.broadcasted_iota(jnp.int32, (Cp, HW), 1) % W
    not_left = col != 0            # fixes the wrap of kj == 0 taps at column 0
    not_right = col != (W - 1)     # fixes the wrap of kj == 2 taps at column W-1

    def patch():
        """im2col RHS (9*Cp, Nb*HW) from 9 lane-shifted views per image.

        Row blocks are Cp (multiple of 8) rows and image columns are HW-lane slabs, so both
        concatenations are tile-aligned copies (no relayout).
        """
        imgs = []
        for n in range(Nb):
            taps = []
            for ki in range(3):
                for kj in range(3):
                    s = BASE + ki * W + kj
                    sl = xbuf[n, :, s:s + HW]                        # (Cp, HW)
                    if kj == 0:
                        sl = jnp.where(not_left, sl, 0.0)
                    elif kj == 2:
                        sl = jnp.where(not_right, sl, 0.0)
                    taps.append(sl)
            imgs.append(jnp.concatenate(taps, axis=0))               # (9*Cp, HW)
        return jnp.concatenate(imgs, axis=1) if Nb > 1 else imgs[0]  # (9*Cp, Nb*HW)

    # ---- stage x (interior starts at a lane-aligned offset) ----
    for n in range(Nb):
        xbuf[n, :C, PAD:PAD + HW] = x_ref[n]

    # ---- conv1 + SiLU ----
    a1 = jnp.dot(w1_ref[...], patch(), preferred_element_type=jnp.float32)
    a1 = a1 + b1_ref[...]
    y1 = a1 * jax.nn.sigmoid(a1)                                     # (Cp, Nb*HW) f32

    # ---- stage y1 (full Cp rows -> unmasked, lane-aligned stores) and conv2 ----
    for n in range(Nb):
        xbuf[n, :, PAD:PAD + HW] = y1[:, n * HW:(n + 1) * HW]
    a2 = jnp.dot(w2_ref[...], patch(), preferred_element_type=jnp.float32)
    a2 = a2 + b2_ref[...]

    # ---- residual add (exact f32 x) + final SiLU; lane-dense per-image stores ----
    for n in range(Nb):
        z = a2[:C, n * HW:(n + 1) * HW] + x_ref[n]
        o_ref[n] = (z * jax.nn.sigmoid(z)).astype(o_ref.dtype)


def _pick_block_n(N, HW):
    """Images per grid step: amortize per-step overhead, keep grid >= 2 for v7x's 2 TCs."""
    if N <= 1 or HW % 128 != 0:
        return 1
    target = max(1, min(N // 2, max(1, 2048 // HW)))
    while N % target:
        target -= 1
    return target


def residual_block_pallas(x_nchw, w1, b1, w2, b2, block_n=None):
    """x_nchw: (N, C, H, W) f32; w*: (Cout, Cin, 3, 3) PyTorch layout; b*: (C,)."""
    N, C, H, W = x_nchw.shape
    HW = H * W
    Cp = _round_up(C, 8)                       # f32 sublane-aligned channel count
    PAD = max(128, _round_up(W + 1, 128))      # lane-aligned interior start (>= top halo)
    SEG = _round_up(PAD + HW + W + 1, 128)     # per-image flat slab length

    if block_n is None:
        block_n = _pick_block_n(N, HW)
    assert N % block_n == 0, (N, block_n)
    grid = N // block_n

    # Glue: x reshape is free (contiguous, no transpose, no cast, no extra HBM copy);
    # weights flattened + zero-padded to (Cp, 9*Cp) matching the im2col row order.
    x2 = x_nchw.reshape(N, C, HW)

    def prep_w(w):
        wt = jnp.transpose(w, (0, 2, 3, 1)).astype(jnp.float32)      # (Cout, 3, 3, Cin)
        wt = jnp.pad(wt, ((0, Cp - C), (0, 0), (0, 0), (0, Cp - C)))
        return wt.reshape(Cp, 9 * Cp)

    def prep_b(b):
        return jnp.pad(b.astype(jnp.float32), (0, Cp - C)).reshape(Cp, 1)

    kernel = functools.partial(_residual_block_kernel,
                               C=C, H=H, W=W, Nb=block_n, PAD=PAD)

    flops = int(N * 2 * 2 * Cp * (9 * Cp) * HW)        # two convs, MAC = 2 flops
    transcendentals = int(N * (Cp + C) * HW)           # two SiLU passes
    bytes_accessed = int(N * C * HW * 4 * 2            # x in + out (f32)
                         + 2 * Cp * 9 * Cp * 4 + 2 * Cp * 4)

    out = pl.pallas_call(
        kernel,
        out_shape=jax.ShapeDtypeStruct((N, C, HW), jnp.float32),
        grid_spec=pltpu.PrefetchScalarGridSpec(
            num_scalar_prefetch=0,
            grid=(grid,),
            in_specs=[
                pl.BlockSpec((block_n, C, HW), lambda g: (g, 0, 0)),
                pl.BlockSpec((Cp, 9 * Cp), lambda g: (0, 0)),
                pl.BlockSpec((Cp, 1), lambda g: (0, 0)),
                pl.BlockSpec((Cp, 9 * Cp), lambda g: (0, 0)),
                pl.BlockSpec((Cp, 1), lambda g: (0, 0)),
            ],
            out_specs=pl.BlockSpec((block_n, C, HW), lambda g: (g, 0, 0)),
            scratch_shapes=[pltpu.VMEM((block_n, Cp, SEG), jnp.float32)],
        ),
        compiler_params=pltpu.CompilerParams(
            dimension_semantics=("parallel",)),
        cost_estimate=pl.CostEstimate(
            flops=flops,
            transcendentals=transcendentals,
            bytes_accessed=bytes_accessed),
    )(x2, prep_w(w1), prep_b(b1), prep_w(w2), prep_b(b2))

    return out.reshape(N, C, H, W)


def _reference(x_nchw, w1, b1, w2, b2):
    """Pure-JAX f32 reference matching PyTorch semantics (NCHW, 3x3, padding=1)."""
    def conv(t, w, b):
        y = lax.conv_general_dilated(
            t, w, window_strides=(1, 1), padding="SAME",
            dimension_numbers=("NCHW", "OIHW", "NCHW"),
            precision=lax.Precision.HIGHEST)
        return y + b.reshape(1, -1, 1, 1)

    silu = lambda t: t * jax.nn.sigmoid(t)
    return silu(x_nchw + conv(silu(conv(x_nchw, w1, b1)), w2, b2))


if __name__ == "__main__":
    # Small but batching-exercising shapes: block_n = 2 -> grid = 2 (both v7x TCs get work).
    N, C, H, W = 4, 4, 16, 16

    key = jax.random.PRNGKey(0)
    kx, kw1, kb1, kw2, kb2 = jax.random.split(key, 5)

    x = jax.random.normal(kx, (N, C, H, W), jnp.float32)
    # PyTorch-shaped parameters: (Cout, Cin, kH, kW) and (Cout,)
    w1 = jax.random.normal(kw1, (C, C, 3, 3), jnp.float32) * 0.1
    b1 = jax.random.normal(kb1, (C,), jnp.float32) * 0.1
    w2 = jax.random.normal(kw2, (C, C, 3, 3), jnp.float32) * 0.1
    b2 = jax.random.normal(kb2, (C,), jnp.float32) * 0.1

    out = residual_block_pallas(x, w1, b1, w2, b2)
    out = jax.block_until_ready(out)

    ref = _reference(x, w1, b1, w2, b2)
    assert out.shape == (N, C, H, W)
    assert jnp.allclose(out, ref, atol=2e-2, rtol=2e-2), "mismatch vs reference"

    print("KERNEL_OK")
</pallas_src>

<mosaic_0001>
module attributes {stable_mosaic.version = 11 : i64} {
  func.func @_residual_block_kernel(%arg0: i32, %arg1: memref<2x4x256xf32, #tpu.memory_space<vmem>>, %arg2: memref<8x72xf32, #tpu.memory_space<vmem>>, %arg3: memref<8x1xf32, #tpu.memory_space<vmem>>, %arg4: memref<8x72xf32, #tpu.memory_space<vmem>>, %arg5: memref<8x1xf32, #tpu.memory_space<vmem>>, %arg6: memref<2x4x256xf32, #tpu.memory_space<vmem>>, %arg7: memref<2x8x512xf32, #tpu.memory_space<vmem>>) attributes {dimension_semantics = [#tpu.dimension_semantics<parallel>], iteration_bounds = array<i64: 2>, scalar_prefetch = 0 : i64, scratch_operands = 1 : i64, tpu.core_type = #tpu.core_type<tc>, window_params = [{transform_indices = @transform_0, window_bounds = array<i64: 2, 4, 256>}, {pipeline_mode = #tpu.pipeline_mode<synchronous>, transform_indices = @transform_1, window_bounds = array<i64: 8, 72>}, {pipeline_mode = #tpu.pipeline_mode<synchronous>, transform_indices = @transform_2, window_bounds = array<i64: 8, 1>}, {pipeline_mode = #tpu.pipeline_mode<synchronous>, transform_indices = @transform_3, window_bounds = array<i64: 8, 72>}, {pipeline_mode = #tpu.pipeline_mode<synchronous>, transform_indices = @transform_4, window_bounds = array<i64: 8, 1>}, {transform_indices = @transform_5, window_bounds = array<i64: 2, 4, 256>}]} {
    %cst = arith.constant 0.000000e+00 : f32
    %0 = vector.broadcast %cst : f32 to vector<2x8x512xf32>
    %c0 = arith.constant 0 : index
    %c0_0 = arith.constant 0 : index
    %c0_1 = arith.constant 0 : index
    %1 = vector.load %arg7[%c0, %c0_0, %c0_1] : memref<2x8x512xf32, #tpu.memory_space<vmem>>, vector<2x8x512xf32>
    tpu.vector_store %arg7[%c0, %c0_0, %c0_1], %0 {strides = array<i32>} : memref<2x8x512xf32, #tpu.memory_space<vmem>>, vector<2x8x512xf32>,
    %2 = tpu.iota {dimensions = array<i32: 1>} : vector<8x256xi32>
    %c16_i32 = arith.constant 16 : i32
    %c0_i32 = arith.constant 0 : i32
    %3 = arith.cmpi eq, %c16_i32, %c0_i32 : i32
    %c1_i32 = arith.constant 1 : i32
    %4 = arith.select %3, %c1_i32, %c16_i32 : i32
    %5 = vector.broadcast %4 : i32 to vector<8x256xi32>
    %6 = arith.remsi %2, %5 : vector<8x256xi32>
    %c0_i32_2 = arith.constant 0 : i32
    %7 = vector.broadcast %c0_i32_2 : i32 to vector<8x256xi32>
    %8 = arith.cmpi ne, %6, %7 : vector<8x256xi32>
    %c0_i32_3 = arith.constant 0 : i32
    %9 = vector.broadcast %c0_i32_3 : i32 to vector<8x256xi32>
    %10 = arith.cmpi slt, %6, %9 : vector<8x256xi32>
    %c0_i32_4 = arith.constant 0 : i32
    %11 = arith.cmpi slt, %4, %c0_i32_4 : i32
    %12 = vector.broadcast %11 : i1 to vector<8x256xi1>
    %13 = vector.broadcast %12 : vector<8x256xi1> to vector<8x256xi1>
    %14 = arith.xori %10, %13 : vector<8x256xi1>
    %15 = arith.andi %14, %8 : vector<8x256xi1>
    %16 = vector.broadcast %4 : i32 to vector<8x256xi32>
    %17 = arith.addi %6, %16 : vector<8x256xi32>
    %18 = arith.select %15, %17, %6 : vector<8x256xi1>, vector<8x256xi32>
    %c0_i32_5 = arith.constant 0 : i32
    %19 = vector.broadcast %c0_i32_5 : i32 to vector<8x256xi32>
    %20 = arith.cmpi ne, %18, %19 : vector<8x256xi32>
    %c15_i32 = arith.constant 15 : i32
    %21 = vector.broadcast %c15_i32 : i32 to vector<8x256xi32>
    %22 = arith.cmpi ne, %18, %21 : vector<8x256xi32>
    %c0_6 = arith.constant 0 : index
    %c0_7 = arith.constant 0 : index
    %c0_8 = arith.constant 0 : index
    %23 = vector.load %arg1[%c0_6, %c0_7, %c0_8] : memref<2x4x256xf32, #tpu.memory_space<vmem>>, vector<1x4x256xf32>
    %24 = vector.shape_cast %23 : vector<1x4x256xf32> to vector<4x256xf32>
    %c0_9 = arith.constant 0 : index
    %c0_10 = arith.constant 0 : index
    %c128 = arith.constant 128 : index
    %25 = vector.load %arg7[%c0_9, %c0_10, %c128] : memref<2x8x512xf32, #tpu.memory_space<vmem>>, vector<1x4x256xf32>
    %26 = vector.shape_cast %25 : vector<1x4x256xf32> to vector<4x256xf32>
    %27 = vector.shape_cast %24 : vector<4x256xf32> to vector<1x4x256xf32>
    tpu.vector_store %arg7[%c0_9, %c0_10, %c128], %27 {strides = array<i32>} : memref<2x8x512xf32, #tpu.memory_space<vmem>>, vector<1x4x256xf32>,
    %c1 = arith.constant 1 : index
    %c0_11 = arith.constant 0 : index
    %c0_12 = arith.constant 0 : index
    %28 = vector.load %arg1[%c1, %c0_11, %c0_12] : memref<2x4x256xf32, #tpu.memory_space<vmem>>, vector<1x4x256xf32>
    %29 = vector.shape_cast %28 : vector<1x4x256xf32> to vector<4x256xf32>
    %c1_13 = arith.constant 1 : index
    %c0_14 = arith.constant 0 : index
    %c128_15 = arith.constant 128 : index
    %30 = vector.load %arg7[%c1_13, %c0_14, %c128_15] : memref<2x8x512xf32, #tpu.memory_space<vmem>>, vector<1x4x256xf32>
    %31 = vector.shape_cast %30 : vector<1x4x256xf32> to vector<4x256xf32>
    %32 = vector.shape_cast %29 : vector<4x256xf32> to vector<1x4x256xf32>
    tpu.vector_store %arg7[%c1_13, %c0_14, %c128_15], %32 {strides = array<i32>} : memref<2x8x512xf32, #tpu.memory_space<vmem>>, vector<1x4x256xf32>,
    %c0_16 = arith.constant 0 : index
    %c0_17 = arith.constant 0 : index
    %33 = vector.load %arg2[%c0_16, %c0_17] : memref<8x72xf32, #tpu.memory_space<vmem>>, vector<8x72xf32>
    %c0_18 = arith.constant 0 : index
    %c0_19 = arith.constant 0 : index
    %c111 = arith.constant 111 : index
    %34 = vector.load %arg7[%c0_18, %c0_19, %c111] : memref<2x8x512xf32, #tpu.memory_space<vmem>>, vector<1x8x256xf32>
    %35 = vector.shape_cast %34 : vector<1x8x256xf32> to vector<8x256xf32>
    %cst_20 = arith.constant 0.000000e+00 : f32
    %36 = vector.broadcast %cst_20 : f32 to vector<8x256xf32>
    %37 = arith.select %20, %35, %36 : vector<8x256xi1>, vector<8x256xf32>
    %c0_21 = arith.constant 0 : index
    %c0_22 = arith.constant 0 : index
    %c112 = arith.constant 112 : index
    %38 = vector.load %arg7[%c0_21, %c0_22, %c112] : memref<2x8x512xf32, #tpu.memory_space<vmem>>, vector<1x8x256xf32>
    %39 = vector.shape_cast %38 : vector<1x8x256xf32> to vector<8x256xf32>
    %c0_23 = arith.constant 0 : index
    %c0_24 = arith.constant 0 : index
    %c113 = arith.constant 113 : index
    %40 = vector.load %arg7[%c0_23, %c0_24, %c113] : memref<2x8x512xf32, #tpu.memory_space<vmem>>, vector<1x8x256xf32>
    %41 = vector.shape_cast %40 : vector<1x8x256xf32> to vector<8x256xf32>
    %cst_25 = arith.constant 0.000000e+00 : f32
    %42 = vector.broadcast %cst_25 : f32 to vector<8x256xf32>
    %43 = arith.select %22, %41, %42 : vector<8x256xi1>, vector<8x256xf32>
    %c0_26 = arith.constant 0 : index
    %c0_27 = arith.constant 0 : index
    %c127 = arith.constant 127 : index
    %44 = vector.load %arg7[%c0_26, %c0_27, %c127] : memref<2x8x512xf32, #tpu.memory_space<vmem>>, vector<1x8x256xf32>
    %45 = vector.shape_cast %44 : vector<1x8x256xf32> to vector<8x256xf32>
    %cst_28 = arith.constant 0.000000e+00 : f32
    %46 = vector.broadcast %cst_28 : f32 to vector<8x256xf32>
    %47 = arith.select %20, %45, %46 : vector<8x256xi1>, vector<8x256xf32>
    %c0_29 = arith.constant 0 : index
    %c0_30 = arith.constant 0 : index
    %c128_31 = arith.constant 128 : index
    %48 = vector.load %arg7[%c0_29, %c0_30, %c128_31] : memref<2x8x512xf32, #tpu.memory_space<vmem>>, vector<1x8x256xf32>
    %49 = vector.shape_cast %48 : vector<1x8x256xf32> to vector<8x256xf32>
    %c0_32 = arith.constant 0 : index
    %c0_33 = arith.constant 0 : index
    %c129 = arith.constant 129 : index
    %50 = vector.load %arg7[%c0_32, %c0_33, %c129] : memref<2x8x512xf32, #tpu.memory_space<vmem>>, vector<1x8x256xf32>
    %51 = vector.shape_cast %50 : vector<1x8x256xf32> to vector<8x256xf32>
    %cst_34 = arith.constant 0.000000e+00 : f32
    %52 = vector.broadcast %cst_34 : f32 to vector<8x256xf32>
    %53 = arith.select %22, %51, %52 : vector<8x256xi1>, vector<8x256xf32>
    %c0_35 = arith.constant 0 : index
    %c0_36 = arith.constant 0 : index
    %c143 = arith.constant 143 : index
    %54 = vector.load %arg7[%c0_35, %c0_36, %c143] : memref<2x8x512xf32, #tpu.memory_space<vmem>>, vector<1x8x256xf32>
    %55 = vector.shape_cast %54 : vector<1x8x256xf32> to vector<8x256xf32>
    %cst_37 = arith.constant 0.000000e+00 : f32
    %56 = vector.broadcast %cst_37 : f32 to vector<8x256xf32>
    %57 = arith.select %20, %55, %56 : vector<8x256xi1>, vector<8x256xf32>
    %c0_38 = arith.constant 0 : index
    %c0_39 = arith.constant 0 : index
    %c144 = arith.constant 144 : index
    %58 = vector.load %arg7[%c0_38, %c0_39, %c144] : memref<2x8x512xf32, #tpu.memory_space<vmem>>, vector<1x8x256xf32>
    %59 = vector.shape_cast %58 : vector<1x8x256xf32> to vector<8x256xf32>
    %c0_40 = arith.constant 0 : index
    %c0_41 = arith.constant 0 : index
    %c145 = arith.constant 145 : index
    %60 = vector.load %arg7[%c0_40, %c0_41, %c145] : memref<2x8x512xf32, #tpu.memory_space<vmem>>, vector<1x8x256xf32>
    %61 = vector.shape_cast %60 : vector<1x8x256xf32> to vector<8x256xf32>
    %cst_42 = arith.constant 0.000000e+00 : f32
    %62 = vector.broadcast %cst_42 : f32 to vector<8x256xf32>
    %63 = arith.select %22, %61, %62 : vector<8x256xi1>, vector<8x256xf32>
    %64 = tpu.concatenate %37, %39, %43, %47, %49, %53, %57, %59, %63 in 0 : vector<8x256xf32>, vector<8x256xf32>, vector<8x256xf32>, vector<8x256xf32>, vector<8x256xf32>, vector<8x256xf32>, vector<8x256xf32>, vector<8x256xf32>, vector<8x256xf32> -> vector<72x256xf32>
    %c1_43 = arith.constant 1 : index
    %c0_44 = arith.constant 0 : index
    %c111_45 = arith.constant 111 : index
    %65 = vector.load %arg7[%c1_43, %c0_44, %c111_45] : memref<2x8x512xf32, #tpu.memory_space<vmem>>, vector<1x8x256xf32>
    %66 = vector.shape_cast %65 : vector<1x8x256xf32> to vector<8x256xf32>
    %cst_46 = arith.constant 0.000000e+00 : f32
    %67 = vector.broadcast %cst_46 : f32 to vector<8x256xf32>
    %68 = arith.select %20, %66, %67 : vector<8x256xi1>, vector<8x256xf32>
    %c1_47 = arith.constant 1 : index
    %c0_48 = arith.constant 0 : index
    %c112_49 = arith.constant 112 : index
    %69 = vector.load %arg7[%c1_47, %c0_48, %c112_49] : memref<2x8x512xf32, #tpu.memory_space<vmem>>, vector<1x8x256xf32>
    %70 = vector.shape_cast %69 : vector<1x8x256xf32> to vector<8x256xf32>
    %c1_50 = arith.constant 1 : index
    %c0_51 = arith.constant 0 : index
    %c113_52 = arith.constant 113 : index
    %71 = vector.load %arg7[%c1_50, %c0_51, %c113_52] : memref<2x8x512xf32, #tpu.memory_space<vmem>>, vector<1x8x256xf32>
    %72 = vector.shape_cast %71 : vector<1x8x256xf32> to vector<8x256xf32>
    %cst_53 = arith.constant 0.000000e+00 : f32
    %73 = vector.broadcast %cst_53 : f32 to vector<8x256xf32>
    %74 = arith.select %22, %72, %73 : vector<8x256xi1>, vector<8x256xf32>
    %c1_54 = arith.constant 1 : index
    %c0_55 = arith.constant 0 : index
    %c127_56 = arith.constant 127 : index
    %75 = vector.load %arg7[%c1_54, %c0_55, %c127_56] : memref<2x8x512xf32, #tpu.memory_space<vmem>>, vector<1x8x256xf32>
    %76 = vector.shape_cast %75 : vector<1x8x256xf32> to vector<8x256xf32>
    %cst_57 = arith.constant 0.000000e+00 : f32
    %77 = vector.broadcast %cst_57 : f32 to vector<8x256xf32>
    %78 = arith.select %20, %76, %77 : vector<8x256xi1>, vector<8x256xf32>
    %c1_58 = arith.constant 1 : index
    %c0_59 = arith.constant 0 : index
    %c128_60 = arith.constant 128 : index
    %79 = vector.load %arg7[%c1_58, %c0_59, %c128_60] : memref<2x8x512xf32, #tpu.memory_space<vmem>>, vector<1x8x256xf32>
    %80 = vector.shape_cast %79 : vector<1x8x256xf32> to vector<8x256xf32>
    %c1_61 = arith.constant 1 : index
    %c0_62 = arith.constant 0 : index
    %c129_63 = arith.constant 129 : index
    %81 = vector.load %arg7[%c1_61, %c0_62, %c129_63] : memref<2x8x512xf32, #tpu.memory_space<vmem>>, vector<1x8x256xf32>
    %82 = vector.shape_cast %81 : vector<1x8x256xf32> to vector<8x256xf32>
    %cst_64 = arith.constant 0.000000e+00 : f32
    %83 = vector.broadcast %cst_64 : f32 to vector<8x256xf32>
    %84 = arith.select %22, %82, %83 : vector<8x256xi1>, vector<8x256xf32>
    %c1_65 = arith.constant 1 : index
    %c0_66 = arith.constant 0 : index
    %c143_67 = arith.constant 143 : index
    %85 = vector.load %arg7[%c1_65, %c0_66, %c143_67] : memref<2x8x512xf32, #tpu.memory_space<vmem>>, vector<1x8x256xf32>
    %86 = vector.shape_cast %85 : vector<1x8x256xf32> to vector<8x256xf32>
    %cst_68 = arith.constant 0.000000e+00 : f32
    %87 = vector.broadcast %cst_68 : f32 to vector<8x256xf32>
    %88 = arith.select %20, %86, %87 : vector<8x256xi1>, vector<8x256xf32>
    %c1_69 = arith.constant 1 : index
    %c0_70 = arith.constant 0 : index
    %c144_71 = arith.constant 144 : index
    %89 = vector.load %arg7[%c1_69, %c0_70, %c144_71] : memref<2x8x512xf32, #tpu.memory_space<vmem>>, vector<1x8x256xf32>
    %90 = vector.shape_cast %89 : vector<1x8x256xf32> to vector<8x256xf32>
    %c1_72 = arith.constant 1 : index
    %c0_73 = arith.constant 0 : index
    %c145_74 = arith.constant 145 : index
    %91 = vector.load %arg7[%c1_72, %c0_73, %c145_74] : memref<2x8x512xf32, #tpu.memory_space<vmem>>, vector<1x8x256xf32>
    %92 = vector.shape_cast %91 : vector<1x8x256xf32> to vector<8x256xf32>
    %cst_75 = arith.constant 0.000000e+00 : f32
    %93 = vector.broadcast %cst_75 : f32 to vector<8x256xf32>
    %94 = arith.select %22, %92, %93 : vector<8x256xi1>, vector<8x256xf32>
    %95 = tpu.concatenate %68, %70, %74, %78, %80, %84, %88, %90, %94 in 0 : vector<8x256xf32>, vector<8x256xf32>, vector<8x256xf32>, vector<8x256xf32>, vector<8x256xf32>, vector<8x256xf32>, vector<8x256xf32>, vector<8x256xf32>, vector<8x256xf32> -> vector<72x256xf32>
    %96 = tpu.concatenate %64, %95 in 1 : vector<72x256xf32>, vector<72x256xf32> -> vector<72x512xf32>
    %cst_76 = arith.constant dense<0.000000e+00> : vector<8x512xf32>
    %97 = tpu.matmul %33, %96, %cst_76 {dimension_numbers = #tpu.dot_dimension_numbers<[1], [0], [0], [1], [0, 0, 1, 1], [], []>} : vector<8x72xf32>, vector<72x512xf32>, vector<8x512xf32> -> vector<8x512xf32>
    %c0_77 = arith.constant 0 : index
    %c0_78 = arith.constant 0 : index
    %98 = vector.load %arg3[%c0_77, %c0_78] : memref<8x1xf32, #tpu.memory_space<vmem>>, vector<8x1xf32>
    %99 = vector.broadcast %98 : vector<8x1xf32> to vector<8x512xf32>
    %100 = arith.addf %97, %99 : vector<8x512xf32>
    %101 = arith.negf %100 : vector<8x512xf32>
    %102 = math.exp %101 : vector<8x512xf32>
    %cst_79 = arith.constant 1.000000e+00 : f32
    %103 = vector.broadcast %cst_79 : f32 to vector<8x512xf32>
    %104 = arith.addf %103, %102 : vector<8x512xf32>
    %105 = arith.divf %103, %104 : vector<8x512xf32>
    %106 = arith.mulf %100, %105 : vector<8x512xf32>
    %107 = vector.extract_strided_slice %106 {offsets = [0, 0], sizes = [8, 256], strides = [1, 1]} : vector<8x512xf32> to vector<8x256xf32>
    %c0_80 = arith.constant 0 : index
    %c0_81 = arith.constant 0 : index
    %c128_82 = arith.constant 128 : index
    %108 = vector.load %arg7[%c0_80, %c0_81, %c128_82] : memref<2x8x512xf32, #tpu.memory_space<vmem>>, vector<1x8x256xf32>
    %109 = vector.shape_cast %108 : vector<1x8x256xf32> to vector<8x256xf32>
    %110 = vector.shape_cast %107 : vector<8x256xf32> to vector<1x8x256xf32>
    tpu.vector_store %arg7[%c0_80, %c0_81, %c128_82], %110 {strides = array<i32>} : memref<2x8x512xf32, #tpu.memory_space<vmem>>, vector<1x8x256xf32>,
    %111 = vector.extract_strided_slice %106 {offsets = [0, 256], sizes = [8, 256], strides = [1, 1]} : vector<8x512xf32> to vector<8x256xf32>
    %c1_83 = arith.constant 1 : index
    %c0_84 = arith.constant 0 : index
    %c128_85 = arith.constant 128 : index
    %112 = vector.load %arg7[%c1_83, %c0_84, %c128_85] : memref<2x8x512xf32, #tpu.memory_space<vmem>>, vector<1x8x256xf32>
    %113 = vector.shape_cast %112 : vector<1x8x256xf32> to vector<8x256xf32>
    %114 = vector.shape_cast %111 : vector<8x256xf32> to vector<1x8x256xf32>
    tpu.vector_store %arg7[%c1_83, %c0_84, %c128_85], %114 {strides = array<i32>} : memref<2x8x512xf32, #tpu.memory_space<vmem>>, vector<1x8x256xf32>,
    %c0_86 = arith.constant 0 : index
    %c0_87 = arith.constant 0 : index
    %115 = vector.load %arg4[%c0_86, %c0_87] : memref<8x72xf32, #tpu.memory_space<vmem>>, vector<8x72xf32>
    %c0_88 = arith.constant 0 : index
    %c0_89 = arith.constant 0 : index
    %c111_90 = arith.constant 111 : index
    %116 = vector.load %arg7[%c0_88, %c0_89, %c111_90] : memref<2x8x512xf32, #tpu.memory_space<vmem>>, vector<1x8x256xf32>
    %117 = vector.shape_cast %116 : vector<1x8x256xf32> to vector<8x256xf32>
    %cst_91 = arith.constant 0.000000e+00 : f32
    %118 = vector.broadcast %cst_91 : f32 to vector<8x256xf32>
    %119 = arith.select %20, %117, %118 : vector<8x256xi1>, vector<8x256xf32>
    %c0_92 = arith.constant 0 : index
    %c0_93 = arith.constant 0 : index
    %c112_94 = arith.constant 112 : index
    %120 = vector.load %arg7[%c0_92, %c0_93, %c112_94] : memref<2x8x512xf32, #tpu.memory_space<vmem>>, vector<1x8x256xf32>
    %121 = vector.shape_cast %120 : vector<1x8x256xf32> to vector<8x256xf32>
    %c0_95 = arith.constant 0 : index
    %c0_96 = arith.constant 0 : index
    %c113_97 = arith.constant 113 : index
    %122 = vector.load %arg7[%c0_95, %c0_96, %c113_97] : memref<2x8x512xf32, #tpu.memory_space<vmem>>, vector<1x8x256xf32>
    %123 = vector.shape_cast %122 : vector<1x8x256xf32> to vector<8x256xf32>
    %cst_98 = arith.constant 0.000000e+00 : f32
    %124 = vector.broadcast %cst_98 : f32 to vector<8x256xf32>
    %125 = arith.select %22, %123, %124 : vector<8x256xi1>, vector<8x256xf32>
    %c0_99 = arith.constant 0 : index
    %c0_100 = arith.constant 0 : index
    %c127_101 = arith.constant 127 : index
    %126 = vector.load %arg7[%c0_99, %c0_100, %c127_101] : memref<2x8x512xf32, #tpu.memory_space<vmem>>, vector<1x8x256xf32>
    %127 = vector.shape_cast %126 : vector<1x8x256xf32> to vector<8x256xf32>
    %cst_102 = arith.constant 0.000000e+00 : f32
    %128 = vector.broadcast %cst_102 : f32 to vector<8x256xf32>
    %129 = arith.select %20, %127, %128 : vector<8x256xi1>, vector<8x256xf32>
    %c0_103 = arith.constant 0 : index
    %c0_104 = arith.constant 0 : index
    %c128_105 = arith.constant 128 : index
    %130 = vector.load %arg7[%c0_103, %c0_104, %c128_105] : memref<2x8x512xf32, #tpu.memory_space<vmem>>, vector<1x8x256xf32>
    %131 = vector.shape_cast %130 : vector<1x8x256xf32> to vector<8x256xf32>
    %c0_106 = arith.constant 0 : index
    %c0_107 = arith.constant 0 : index
    %c129_108 = arith.constant 129 : index
    %132 = vector.load %arg7[%c0_106, %c0_107, %c129_108] : memref<2x8x512xf32, #tpu.memory_space<vmem>>, vector<1x8x256xf32>
    %133 = vector.shape_cast %132 : vector<1x8x256xf32> to vector<8x256xf32>
    %cst_109 = arith.constant 0.000000e+00 : f32
    %134 = vector.broadcast %cst_109 : f32 to vector<8x256xf32>
    %135 = arith.select %22, %133, %134 : vector<8x256xi1>, vector<8x256xf32>
    %c0_110 = arith.constant 0 : index
    %c0_111 = arith.constant 0 : index
    %c143_112 = arith.constant 143 : index
    %136 = vector.load %arg7[%c0_110, %c0_111, %c143_112] : memref<2x8x512xf32, #tpu.memory_space<vmem>>, vector<1x8x256xf32>
    %137 = vector.shape_cast %136 : vector<1x8x256xf32> to vector<8x256xf32>
    %cst_113 = arith.constant 0.000000e+00 : f32
    %138 = vector.broadcast %cst_113 : f32 to vector<8x256xf32>
    %139 = arith.select %20, %137, %138 : vector<8x256xi1>, vector<8x256xf32>
    %c0_114 = arith.constant 0 : index
    %c0_115 = arith.constant 0 : index
    %c144_116 = arith.constant 144 : index
    %140 = vector.load %arg7[%c0_114, %c0_115, %c144_116] : memref<2x8x512xf32, #tpu.memory_space<vmem>>, vector<1x8x256xf32>
    %141 = vector.shape_cast %140 : vector<1x8x256xf32> to vector<8x256xf32>
    %c0_117 = arith.constant 0 : index
    %c0_118 = arith.constant 0 : index
    %c145_119 = arith.constant 145 : index
    %142 = vector.load %arg7[%c0_117, %c0_118, %c145_119] : memref<2x8x512xf32, #tpu.memory_space<vmem>>, vector<1x8x256xf32>
    %143 = vector.shape_cast %142 : vector<1x8x256xf32> to vector<8x256xf32>
    %cst_120 = arith.constant 0.000000e+00 : f32
    %144 = vector.broadcast %cst_120 : f32 to vector<8x256xf32>
    %145 = arith.select %22, %143, %144 : vector<8x256xi1>, vector<8x256xf32>
    %146 = tpu.concatenate %119, %121, %125, %129, %131, %135, %139, %141, %145 in 0 : vector<8x256xf32>, vector<8x256xf32>, vector<8x256xf32>, vector<8x256xf32>, vector<8x256xf32>, vector<8x256xf32>, vector<8x256xf32>, vector<8x256xf32>, vector<8x256xf32> -> vector<72x256xf32>
    %c1_121 = arith.constant 1 : index
    %c0_122 = arith.constant 0 : index
    %c111_123 = arith.constant 111 : index
    %147 = vector.load %arg7[%c1_121, %c0_122, %c111_123] : memref<2x8x512xf32, #tpu.memory_space<vmem>>, vector<1x8x256xf32>
    %148 = vector.shape_cast %147 : vector<1x8x256xf32> to vector<8x256xf32>
    %cst_124 = arith.constant 0.000000e+00 : f32
    %149 = vector.broadcast %cst_124 : f32 to vector<8x256xf32>
    %150 = arith.select %20, %148, %149 : vector<8x256xi1>, vector<8x256xf32>
    %c1_125 = arith.constant 1 : index
    %c0_126 = arith.constant 0 : index
    %c112_127 = arith.constant 112 : index
    %151 = vector.load %arg7[%c1_125, %c0_126, %c112_127] : memref<2x8x512xf32, #tpu.memory_space<vmem>>, vector<1x8x256xf32>
    %152 = vector.shape_cast %151 : vector<1x8x256xf32> to vector<8x256xf32>
    %c1_128 = arith.constant 1 : index
    %c0_129 = arith.constant 0 : index
    %c113_130 = arith.constant 113 : index
    %153 = vector.load %arg7[%c1_128, %c0_129, %c113_130] : memref<2x8x512xf32, #tpu.memory_space<vmem>>, vector<1x8x256xf32>
    %154 = vector.shape_cast %153 : vector<1x8x256xf32> to vector<8x256xf32>
    %cst_131 = arith.constant 0.000000e+00 : f32
    %155 = vector.broadcast %cst_131 : f32 to vector<8x256xf32>
    %156 = arith.select %22, %154, %155 : vector<8x256xi1>, vector<8x256xf32>
    %c1_132 = arith.constant 1 : index
    %c0_133 = arith.constant 0 : index
    %c127_134 = arith.constant 127 : index
    %157 = vector.load %arg7[%c1_132, %c0_133, %c127_134] : memref<2x8x512xf32, #tpu.memory_space<vmem>>, vector<1x8x256xf32>
    %158 = vector.shape_cast %157 : vector<1x8x256xf32> to vector<8x256xf32>
    %cst_135 = arith.constant 0.000000e+00 : f32
    %159 = vector.broadcast %cst_135 : f32 to vector<8x256xf32>
    %160 = arith.select %20, %158, %159 : vector<8x256xi1>, vector<8x256xf32>
    %c1_136 = arith.constant 1 : index
    %c0_137 = arith.constant 0 : index
    %c128_138 = arith.constant 128 : index
    %161 = vector.load %arg7[%c1_136, %c0_137, %c128_138] : memref<2x8x512xf32, #tpu.memory_space<vmem>>, vector<1x8x256xf32>
    %162 = vector.shape_cast %161 : vector<1x8x256xf32> to vector<8x256xf32>
    %c1_139 = arith.constant 1 : index
    %c0_140 = arith.constant 0 : index
    %c129_141 = arith.constant 129 : index
    %163 = vector.load %arg7[%c1_139, %c0_140, %c129_141] : memref<2x8x512xf32, #tpu.memory_space<vmem>>, vector<1x8x256xf32>
    %164 = vector.shape_cast %163 : vector<1x8x256xf32> to vector<8x256xf32>
    %cst_142 = arith.constant 0.000000e+00 : f32
    %165 = vector.broadcast %cst_142 : f32 to vector<8x256xf32>
    %166 = arith.select %22, %164, %165 : vector<8x256xi1>, vector<8x256xf32>
    %c1_143 = arith.constant 1 : index
    %c0_144 = arith.constant 0 : index
    %c143_145 = arith.constant 143 : index
    %167 = vector.load %arg7[%c1_143, %c0_144, %c143_145] : memref<2x8x512xf32, #tpu.memory_space<vmem>>, vector<1x8x256xf32>
    %168 = vector.shape_cast %167 : vector<1x8x256xf32> to vector<8x256xf32>
    %cst_146 = arith.constant 0.000000e+00 : f32
    %169 = vector.broadcast %cst_146 : f32 to vector<8x256xf32>
    %170 = arith.select %20, %168, %169 : vector<8x256xi1>, vector<8x256xf32>
    %c1_147 = arith.constant 1 : index
    %c0_148 = arith.constant 0 : index
    %c144_149 = arith.constant 144 : index
    %171 = vector.load %arg7[%c1_147, %c0_148, %c144_149] : memref<2x8x512xf32, #tpu.memory_space<vmem>>, vector<1x8x256xf32>
    %172 = vector.shape_cast %171 : vector<1x8x256xf32> to vector<8x256xf32>
    %c1_150 = arith.constant 1 : index
    %c0_151 = arith.constant 0 : index
    %c145_152 = arith.constant 145 : index
    %173 = vector.load %arg7[%c1_150, %c0_151, %c145_152] : memref<2x8x512xf32, #tpu.memory_space<vmem>>, vector<1x8x256xf32>
    %174 = vector.shape_cast %173 : vector<1x8x256xf32> to vector<8x256xf32>
    %cst_153 = arith.constant 0.000000e+00 : f32
    %175 = vector.broadcast %cst_153 : f32 to vector<8x256xf32>
    %176 = arith.select %22, %174, %175 : vector<8x256xi1>, vector<8x256xf32>
    %177 = tpu.concatenate %150, %152, %156, %160, %162, %166, %170, %172, %176 in 0 : vector<8x256xf32>, vector<8x256xf32>, vector<8x256xf32>, vector<8x256xf32>, vector<8x256xf32>, vector<8x256xf32>, vector<8x256xf32>, vector<8x256xf32>, vector<8x256xf32> -> vector<72x256xf32>
    %178 = tpu.concatenate %146, %177 in 1 : vector<72x256xf32>, vector<72x256xf32> -> vector<72x512xf32>
    %cst_154 = arith.constant dense<0.000000e+00> : vector<8x512xf32>
    %179 = tpu.matmul %115, %178, %cst_154 {dimension_numbers = #tpu.dot_dimension_numbers<[1], [0], [0], [1], [0, 0, 1, 1], [], []>} : vector<8x72xf32>, vector<72x512xf32>, vector<8x512xf32> -> vector<8x512xf32>
    %c0_155 = arith.constant 0 : index
    %c0_156 = arith.constant 0 : index
    %180 = vector.load %arg5[%c0_155, %c0_156] : memref<8x1xf32, #tpu.memory_space<vmem>>, vector<8x1xf32>
    %181 = vector.broadcast %180 : vector<8x1xf32> to vector<8x512xf32>
    %182 = arith.addf %179, %181 : vector<8x512xf32>
    %183 = vector.extract_strided_slice %182 {offsets = [0, 0], sizes = [4, 256], strides = [1, 1]} : vector<8x512xf32> to vector<4x256xf32>
    %c0_157 = arith.constant 0 : index
    %c0_158 = arith.constant 0 : index
    %c0_159 = arith.constant 0 : index
    %184 = vector.load %arg1[%c0_157, %c0_158, %c0_159] : memref<2x4x256xf32, #tpu.memory_space<vmem>>, vector<1x4x256xf32>
    %185 = vector.shape_cast %184 : vector<1x4x256xf32> to vector<4x256xf32>
    %186 = arith.addf %183, %185 : vector<4x256xf32>
    %187 = arith.negf %186 : vector<4x256xf32>
    %188 = math.exp %187 : vector<4x256xf32>
    %cst_160 = arith.constant 1.000000e+00 : f32
    %189 = vector.broadcast %cst_160 : f32 to vector<4x256xf32>
    %190 = arith.addf %189, %188 : vector<4x256xf32>
    %191 = arith.divf %189, %190 : vector<4x256xf32>
    %192 = arith.mulf %186, %191 : vector<4x256xf32>
    %c0_161 = arith.constant 0 : index
    %c0_162 = arith.constant 0 : index
    %c0_163 = arith.constant 0 : index
    %193 = vector.load %arg6[%c0_161, %c0_162, %c0_163] : memref<2x4x256xf32, #tpu.memory_space<vmem>>, vector<1x4x256xf32>
    %194 = vector.shape_cast %193 : vector<1x4x256xf32> to vector<4x256xf32>
    %195 = vector.shape_cast %192 : vector<4x256xf32> to vector<1x4x256xf32>
    tpu.vector_store %arg6[%c0_161, %c0_162, %c0_163], %195 {strides = array<i32>} : memref<2x4x256xf32, #tpu.memory_space<vmem>>, vector<1x4x256xf32>,
    %196 = vector.extract_strided_slice %182 {offsets = [0, 256], sizes = [4, 256], strides = [1, 1]} : vector<8x512xf32> to vector<4x256xf32>
    %c1_164 = arith.constant 1 : index
    %c0_165 = arith.constant 0 : index
    %c0_166 = arith.constant 0 : index
    %197 = vector.load %arg1[%c1_164, %c0_165, %c0_166] : memref<2x4x256xf32, #tpu.memory_space<vmem>>, vector<1x4x256xf32>
    %198 = vector.shape_cast %197 : vector<1x4x256xf32> to vector<4x256xf32>
    %199 = arith.addf %196, %198 : vector<4x256xf32>
    %200 = arith.negf %199 : vector<4x256xf32>
    %201 = math.exp %200 : vector<4x256xf32>
    %cst_167 = arith.constant 1.000000e+00 : f32
    %202 = vector.broadcast %cst_167 : f32 to vector<4x256xf32>
    %203 = arith.addf %202, %201 : vector<4x256xf32>
    %204 = arith.divf %202, %203 : vector<4x256xf32>
    %205 = arith.mulf %199, %204 : vector<4x256xf32>
    %c1_168 = arith.constant 1 : index
    %c0_169 = arith.constant 0 : index
    %c0_170 = arith.constant 0 : index
    %206 = vector.load %arg6[%c1_168, %c0_169, %c0_170] : memref<2x4x256xf32, #tpu.memory_space<vmem>>, vector<1x4x256xf32>
    %207 = vector.shape_cast %206 : vector<1x4x256xf32> to vector<4x256xf32>
    %208 = vector.shape_cast %205 : vector<4x256xf32> to vector<1x4x256xf32>
    tpu.vector_store %arg6[%c1_168, %c0_169, %c0_170], %208 {strides = array<i32>} : memref<2x4x256xf32, #tpu.memory_space<vmem>>, vector<1x4x256xf32>,
    return
  }
  func.func @transform_0(%arg0: i32) -> (i32, i32, i32) {
    %c0_i32 = arith.constant 0 : i32
    %c0_i32_0 = arith.constant 0 : i32
    %c0_i32_1 = arith.constant 0 : i32
    return %arg0, %c0_i32, %c0_i32_0 : i32, i32, i32
  }
  func.func @transform_1(%arg0: i32) -> (i32, i32) {
    %c0_i32 = arith.constant 0 : i32
    %c0_i32_0 = arith.constant 0 : i32
    %c0_i32_1 = arith.constant 0 : i32
    return %c0_i32, %c0_i32_0 : i32, i32
  }
  func.func @transform_2(%arg0: i32) -> (i32, i32) {
    %c0_i32 = arith.constant 0 : i32
    %c0_i32_0 = arith.constant 0 : i32
    %c0_i32_1 = arith.constant 0 : i32
    return %c0_i32, %c0_i32_0 : i32, i32
  }
  func.func @transform_3(%arg0: i32) -> (i32, i32) {
    %c0_i32 = arith.constant 0 : i32
    %c0_i32_0 = arith.constant 0 : i32
    %c0_i32_1 = arith.constant 0 : i32
    return %c0_i32, %c0_i32_0 : i32, i32
  }
  func.func @transform_4(%arg0: i32) -> (i32, i32) {
    %c0_i32 = arith.constant 0 : i32
    %c0_i32_0 = arith.constant 0 : i32
    %c0_i32_1 = arith.constant 0 : i32
    return %c0_i32, %c0_i32_0 : i32, i32
  }
  func.func @transform_5(%arg0: i32) -> (i32, i32, i32) {
    %c0_i32 = arith.constant 0 : i32
    %c0_i32_0 = arith.constant 0 : i32
    %c0_i32_1 = arith.constant 0 : i32
    return %arg0, %c0_i32, %c0_i32_0 : i32, i32, i32
  }
}

</mosaic_0001>

<llo_original>
// kernel: tpu_custom_call.1
$region0: #{tpu_custom_call.1}
  #allocation0 [shape = 'u32[]', space=smem, size = 0x4, offset = 0x4, fixed_abs, tag = 'smem constant byte address 0x4 - core index']
  #allocation1 [shape = 'u32[144,128]{1,0:T(1,128)}', space=vmem, size = 0x12000, scoped, tag = 'internal scratch']
  #allocation2 [shape = 'f32[2,8,512]{2,1,0:T(8,128)}', space=vmem, size = 0x8000, scoped, tag = 'scratch operand']
  %s0 = inlined_call_operand.hbm [shape: f32[4,4,256], index: 0, kind: input, shape index: {}]
  %s1 = inlined_call_operand.vmem [shape: f32[8,72], index: 1, kind: input, shape index: {}]
  %s2 = inlined_call_operand.vmem [shape: f32[8,1], index: 2, kind: input, shape index: {}]
  %s3 = inlined_call_operand.vmem [shape: f32[8,72], index: 3, kind: input, shape index: {}]
  %s4 = inlined_call_operand.vmem [shape: f32[8,1], index: 4, kind: input, shape index: {}]
  %s5 = inlined_call_operand.hbm [shape: f32[4,4,256], index: 5, kind: output, shape index: {}]
  %s6 = sld [smem:[#allocation0]]
  $region57: #{tpu_custom_call.1} parent=0
    _
  %s8 = ssub.s32 1, %s6
  %s9 = scalar_select 0, %s8, %s6
  $region1: #{tpu_custom_call.1} parent=0
    #allocation3 [shape = 'u8[16384]{0}', space=vmem, size = 0x4000, scoped, tag = 'input window, operand 0']
    #allocation4 [shape = 's32[2]{0}', space=sflag, size = 0x8, scoped, tag = 'scoped memory for tpu_custom_call.1']
    #allocation5 [shape = 's32[2]{0}', space=sflag, size = 0x8, scoped, tag = 'scoped memory for tpu_custom_call.1']
    #allocation6 [shape = 'u8[16384]{0}', space=vmem, size = 0x4000, scoped, tag = 'output window, operand 0']
    %10 = vsyncpa [#allocation4], 0
    %s11 = scalar_lea.sflag [#allocation4], 1
    %12 = vsyncpa %s11, 0
    %13 = vsyncpa [#allocation5], 0
    %s14 = scalar_lea.sflag [#allocation5], 1
    %15 = vsyncpa %s14, 0
    loop: start=0, step=1, limit=4
    $region2: #{tpu_custom_call.1} parent=1 // loop_pre_header
      _
    $region3: #{tpu_custom_call.1} parent=1 // loop_header
      %s17 = sphi 0, %s21
      %p18 = scmp.ge.s32.totalorder %s17, 4
      %s27 = sphi 0, %s29
      %s30 = sphi 0, %s27
      %s31 = sphi 0, %s30
      %s47 = sphi 0, %s31
      %s51 = sphi 0, %s51
      %s53 = sphi 0, %s51
      %s54 = sphi 0, %s53
      %s68 = sphi 0, %s54
      %s72 = sphi 0, %s72
      %s74 = sphi 0, %s72
      %s75 = sphi 0, %s74
      %s89 = sphi 0, %s75
      %s93 = sphi 0, %s93
      %s95 = sphi 0, %s93
      %s96 = sphi 0, %s95
      %s110 = sphi 0, %s96
      %s114 = sphi 0, %s114
      %s116 = sphi 0, %s114
      %s117 = sphi 0, %s116
      %s131 = sphi 0, %s117
      %s137 = sphi 0, %s139
      %s140 = sphi 0, %s137
      %s141 = sphi 0, %s140
      %s157 = sphi 0, %s141
    $region4: #{tpu_custom_call.1} parent=1 // loop_header_branch
      %20 = sbr.rel (%p18) target = $region8
    $region5: #{tpu_custom_call.1} parent=1 // loop_body
      %s22 = ssub.s32 %s17, 1
      %s23 = ssub.s32 %s17, 2
      %s24 = sadd.s32 %s17, 1
      %s25 = ssub.s32 %s17, %s24
      %p26 = scmp.eq.s32.totalorder %s25, 0
      %s28 = sadd.s32 %s27, 1
      %s29 = scalar_select %p26, %s27, %s28
      %p32 = pneg %p26
      %p33 = scmp.eq.s32.totalorder %s17, 1
      %p34 = por %p32, %p33
      %p35 = scmp.ne.s32.totalorder %s27, %s30
      %p36 = scmp.eq.s32.totalorder %s17, 0
      %p37 = por %p35, %p36
      %p38 = scmp.ne.s32.totalorder %s27, %s30
      %p39 = scmp.eq.s32.totalorder %s22, 1
      %p40 = por %p38, %p39
      %p41 = scmp.ne.s32.totalorder %s30, %s31
      %p42 = scmp.eq.s32.totalorder %s22, 0
      %p43 = por %p41, %p42
      %p44 = scmp.ne.s32.totalorder %s30, %s31
      %p45 = scmp.eq.s32.totalorder %s23, 1
      %p46 = por %p44, %p45
      %p48 = scmp.ne.s32.totalorder %s31, %s47
      %p49 = scmp.eq.s32.totalorder %s23, 0
      %p50 = por %p48, %p49
      %s52 = sadd.s32 %s51, 1
      %p55 = scmp.eq.s32.totalorder %s17, 1
      %p56 = scmp.ne.s32.totalorder %s51, %s53
      %p57 = scmp.eq.s32.totalorder %s17, 0
      %p58 = por %p56, %p57
      %p59 = scmp.ne.s32.totalorder %s51, %s53
      %p60 = scmp.eq.s32.totalorder %s22, 1
      %p61 = por %p59, %p60
      %p62 = scmp.ne.s32.totalorder %s53, %s54
      %p63 = scmp.eq.s32.totalorder %s22, 0
      %p64 = por %p62, %p63
      %p65 = scmp.ne.s32.totalorder %s53, %s54
      %p66 = scmp.eq.s32.totalorder %s23, 1
      %p67 = por %p65, %p66
      %p69 = scmp.ne.s32.totalorder %s54, %s68
      %p70 = scmp.eq.s32.totalorder %s23, 0
      %p71 = por %p69, %p70
      %s73 = sadd.s32 %s72, 1
      %p76 = scmp.eq.s32.totalorder %s17, 1
      %p77 = scmp.ne.s32.totalorder %s72, %s74
      %p78 = scmp.eq.s32.totalorder %s17, 0
      %p79 = por %p77, %p78
      %p80 = scmp.ne.s32.totalorder %s72, %s74
      %p81 = scmp.eq.s32.totalorder %s22, 1
      %p82 = por %p80, %p81
      %p83 = scmp.ne.s32.totalorder %s74, %s75
      %p84 = scmp.eq.s32.totalorder %s22, 0
      %p85 = por %p83, %p84
      %p86 = scmp.ne.s32.totalorder %s74, %s75
      %p87 = scmp.eq.s32.totalorder %s23, 1
      %p88 = por %p86, %p87
      %p90 = scmp.ne.s32.totalorder %s75, %s89
      %p91 = scmp.eq.s32.totalorder %s23, 0
      %p92 = por %p90, %p91
      %s94 = sadd.s32 %s93, 1
      %p97 = scmp.eq.s32.totalorder %s17, 1
      %p98 = scmp.ne.s32.totalorder %s93, %s95
      %p99 = scmp.eq.s32.totalorder %s17, 0
      %p100 = por %p98, %p99
      %p101 = scmp.ne.s32.totalorder %s93, %s95
      %p102 = scmp.eq.s32.totalorder %s22, 1
      %p103 = por %p101, %p102
      %p104 = scmp.ne.s32.totalorder %s95, %s96
      %p105 = scmp.eq.s32.totalorder %s22, 0
      %p106 = por %p104, %p105
      %p107 = scmp.ne.s32.totalorder %s95, %s96
      %p108 = scmp.eq.s32.totalorder %s23, 1
      %p109 = por %p107, %p108
      %p111 = scmp.ne.s32.totalorder %s96, %s110
      %p112 = scmp.eq.s32.totalorder %s23, 0
      %p113 = por %p111, %p112
      %s115 = sadd.s32 %s114, 1
      %p118 = scmp.eq.s32.totalorder %s17, 1
      %p119 = scmp.ne.s32.totalorder %s114, %s116
      %p120 = scmp.eq.s32.totalorder %s17, 0
      %p121 = por %p119, %p120
      %p122 = scmp.ne.s32.totalorder %s114, %s116
      %p123 = scmp.eq.s32.totalorder %s22, 1
      %p124 = por %p122, %p123
      %p125 = scmp.ne.s32.totalorder %s116, %s117
      %p126 = scmp.eq.s32.totalorder %s22, 0
      %p127 = por %p125, %p126
      %p128 = scmp.ne.s32.totalorder %s116, %s117
      %p129 = scmp.eq.s32.totalorder %s23, 1
      %p130 = por %p128, %p129
      %p132 = scmp.ne.s32.totalorder %s117, %s131
      %p133 = scmp.eq.s32.totalorder %s23, 0
      %p134 = por %p132, %p133
      %s135 = ssub.s32 %s17, %s24
      %p136 = scmp.eq.s32.totalorder %s135, 0
      %s138 = sadd.s32 %s137, 1
      %s139 = scalar_select %p136, %s137, %s138
      %p142 = pneg %p136
      %p143 = scmp.eq.s32.totalorder %s17, 1
      %p144 = por %p142, %p143
      %p145 = scmp.ne.s32.totalorder %s137, %s140
      %p146 = scmp.eq.s32.totalorder %s17, 0
      %p147 = por %p145, %p146
      %p148 = scmp.ne.s32.totalorder %s137, %s140
      %p149 = scmp.eq.s32.totalorder %s22, 1
      %p150 = por %p148, %p149
      %p151 = scmp.ne.s32.totalorder %s140, %s141
      %p152 = scmp.eq.s32.totalorder %s22, 0
      %p153 = por %p151, %p152
      %p154 = scmp.ne.s32.totalorder %s140, %s141
      %p155 = scmp.eq.s32.totalorder %s23, 1
      %p156 = por %p154, %p155
      %p158 = scmp.ne.s32.totalorder %s141, %s157
      %p159 = scmp.eq.s32.totalorder %s23, 0
      %p160 = por %p158, %p159
      %p161 = scmp.le.s32.totalorder 1, %s17
      %p162 = scmp.lt.s32.totalorder %s17, 3
      %p163 = pnand %p161, %p162
      %p164 = pneg %p163
      // Predicated region
      $region9: #{tpu_custom_call.1} parent=5 // pred_check
        _
      $region10: #{tpu_custom_call.1} parent=5 // pred_check_branch
        %166 = sbr.rel (%p163) target = $region12
      $region11: #{tpu_custom_call.1} parent=5 // pred_region
        %s167 = ssub.s32 %s17, 1
        // Predicated region
        $region13: #{tpu_custom_call.1} parent=11 // pred_check
          %p168 = pneg %p64
        $region14: #{tpu_custom_call.1} parent=11 // pred_check_branch
          %170 = sbr.rel (%p168) target = $region16
        $region15: #{tpu_custom_call.1} parent=11 // pred_region
          _
        $region16: #{tpu_custom_call.1} parent=11 // pred_fallthru
          _
        // Predicated region
        $region17: #{tpu_custom_call.1} parent=11 // pred_check
          %p171 = pneg %p85
        $region18: #{tpu_custom_call.1} parent=11 // pred_check_branch
          %173 = sbr.rel (%p171) target = $region20
        $region19: #{tpu_custom_call.1} parent=11 // pred_region
          _
        $region20: #{tpu_custom_call.1} parent=11 // pred_fallthru
          _
        // Predicated region
        $region21: #{tpu_custom_call.1} parent=11 // pred_check
          %p174 = pneg %p106
        $region22: #{tpu_custom_call.1} parent=11 // pred_check_branch
          %176 = sbr.rel (%p174) target = $region24
        $region23: #{tpu_custom_call.1} parent=11 // pred_region
          _
        $region24: #{tpu_custom_call.1} parent=11 // pred_fallthru
          _
        // Predicated region
        $region25: #{tpu_custom_call.1} parent=11 // pred_check
          %p177 = pneg %p127
        $region26: #{tpu_custom_call.1} parent=11 // pred_check_branch
          %179 = sbr.rel (%p177) target = $region28
        $region27: #{tpu_custom_call.1} parent=11 // pred_region
          _
        $region28: #{tpu_custom_call.1} parent=11 // pred_fallthru
          _
      $region12: #{tpu_custom_call.1} parent=5 // pred_fallthru
        _
      %p180 = scmp.lt.s32.totalorder %s17, 2
      // Predicated region
      $region29: #{tpu_custom_call.1} parent=5 // pred_check
        %p181 = pneg %p180
      $region30: #{tpu_custom_call.1} parent=5 // pred_check_branch
        %183 = sbr.rel (%p181) target = $region32
      $region31: #{tpu_custom_call.1} parent=5 // pred_region
        // Predicated region
        $region33: #{tpu_custom_call.1} parent=31 // pred_check
          %p184 = pneg %p37
        $region34: #{tpu_custom_call.1} parent=31 // pred_check_branch
          %186 = sbr.rel (%p184) target = $region36
        $region35: #{tpu_custom_call.1} parent=31 // pred_region
          %s187 = sand.u32 %s27, 1
          %s188 = scalar_lea.sflag [#allocation4], %s187
          %s189 = sand.u32 %s27, 1
          %s190 = smul.addr %s189, 16
          %s191 = scalar_lea.vmem [#allocation3], %s190
          %s192 = smul.u32 2, %s17
          %s194 = ssub.s32 256, 256
          %195 = vsyncadd %s188, %s194
          %s196 = smul.addr %s192, 2
          %s197 = smul.addr %s196, 64
          %s198 = scalar_lea.hbm %s0, %s197
          %s199 = sshll.u32 %s191, 4
          %s200 = int_to_ptr.vmem [resolvable:$true] %s199
          %205 = dma.hbm_to_vmem [thread:$0]  %s198, 256, %s200, %s188, 128, 128, 8
        $region36: #{tpu_custom_call.1} parent=31 // pred_fallthru
          _
      $region32: #{tpu_custom_call.1} parent=5 // pred_fallthru
        _
      %p206 = scmp.le.s32.totalorder 1, %s17
      %p207 = scmp.lt.s32.totalorder %s17, 3
      %p208 = pnand %p206, %p207
      %p209 = pneg %p208
      // Predicated region
      $region37: #{tpu_custom_call.1} parent=5 // pred_check
        _
      $region38: #{tpu_custom_call.1} parent=5 // pred_check_branch
        %211 = sbr.rel (%p208) target = $region40
      $region39: #{tpu_custom_call.1} parent=5 // pred_region
        %s212 = ssub.s32 %s17, 1
        %s213 = sand.u32 %s30, 1
        %s214 = scalar_lea.sflag [#allocation4], %s213
        %s215 = sand.u32 %s30, 1
        %s216 = smul.addr %s215, 16
        %s217 = scalar_lea.vmem [#allocation3], %s216
        // Predicated region
        $region41: #{tpu_custom_call.1} parent=39 // pred_check
          %p218 = pneg %p43
        $region42: #{tpu_custom_call.1} parent=39 // pred_check_branch
          %220 = sbr.rel (%p218) target = $region44
        $region43: #{tpu_custom_call.1} parent=39 // pred_region
          %221 = dma.done %s214, 256
        $region44: #{tpu_custom_call.1} parent=39 // pred_fallthru
          _
        %s222 = sand.u32 %s30, 1
        %s223 = scalar_lea.sflag [#allocation4], %s222
        %s224 = sand.u32 %s30, 1
        %s225 = smul.addr %s224, 16
        %s226 = scalar_lea.vmem [#allocation3], %s225
        %p227 = pneg %p43
        %p228 = pneg %p40
        %p229 = pneg %p64
        %p230 = pneg %p61
        %p231 = pneg %p85
        %p232 = pneg %p82
        %p233 = pneg %p106
        %p234 = pneg %p103
        %p235 = pneg %p127
        %p236 = pneg %p124
        %p237 = pneg %p153
        %p238 = pneg %p150
        %s239 = sand.u32 %s140, 1
        %s240 = scalar_lea.sflag [#allocation5], %s239
        %s241 = sand.u32 %s140, 1
        %s242 = smul.addr %s241, 16
        %s243 = scalar_lea.vmem [#allocation6], %s242
        %s244 = smul.u32 2, %s22
        %s245 = smul.u32 2, %s22
        %246 = vst [vmem:[#allocation2] sm:$0xff] 0.0
        %247 = vst [vmem:[#allocation2 + $0x8] sm:$0xff] 0.0
        %248 = vst [vmem:[#allocation2 + $0x10] sm:$0xff] 0.0
        %249 = vst [vmem:[#allocation2 + $0x18] sm:$0xff] 0.0
        %250 = vst [vmem:[#allocation2 + $0x20] sm:$0xff] 0.0
        %251 = vst [vmem:[#allocation2 + $0x28] sm:$0xff] 0.0
        %252 = vst [vmem:[#allocation2 + $0x30] sm:$0xff] 0.0
        %253 = vst [vmem:[#allocation2 + $0x38] sm:$0xff] 0.0
        %v254 = vlaneseq
        %v255 = vand.u32 %v254, 127
        %v256 = vadd.s32 %v255, 128
        %vm257 = vcmp.lt.s32.totalorder %v255, 0
        %v258 = vsub.s32 0, %v255
        %v259 = vsel %vm257, %v258, %v255
        %v260 = vshrl.u32 %v259, 4
        %v261 = vand.u32 %v259, 15
        %v262 = vsub.s32 0, %v261
        %v263 = vsel %vm257, %v262, %v261
        %vm264 = vcmp.lt.s32.totalorder %v256, 0
        %v265 = vsub.s32 0, %v256
        %v266 = vsel %vm264, %v265, %v256
        %v267 = vshrl.u32 %v266, 4
        %v268 = vand.u32 %v266, 15
        %v269 = vsub.s32 0, %v268
        %v270 = vsel %vm264, %v269, %v268
        %vm271 = vcmp.ne.s32.totalorder %v263, 0
        %vm272 = vcmp.ne.s32.totalorder %v270, 0
        %vm273 = vcmp.lt.s32.totalorder %v263, 0
        %vm274 = vcmp.lt.s32.totalorder %v270, 0
        %vm275 = vmand %vm273, %vm271
        %vm276 = vmand %vm274, %vm272
        %v277 = vadd.s32 %v263, 16
        %v278 = vadd.s32 %v270, 16
        %v279 = vsel %vm275, %v277, %v263
        %v280 = vsel %vm276, %v278, %v270
        %vm281 = vcmp.ne.s32.totalorder %v279, 0
        %vm282 = vcmp.ne.s32.totalorder %v280, 0
        %vm283 = vcmp.ne.s32.totalorder %v279, 15
        %vm284 = vcmp.ne.s32.totalorder %v280, 15
        %v285 = vld [vmem:[%s217] sm:$0xff]
        %v287 = vcombine.high %v285, %v285
        %289 = vst [vmem:[#allocation2 + $0x8] sm:$0xf] %v285
        %290 = vst [vmem:[#allocation2 + $0x10] sm:$0xf] %v287
        %s291 = scalar_lea.vmem %s217, 8 [#allocation3]
        %v292 = vld [vmem:[%s291] sm:$0xff]
        %v294 = vcombine.high %v292, %v292
        %s296 = scalar_lea.vmem [#allocation2], 32
        %297 = vst [vmem:[%s296 + $0x8] sm:$0xf] %v292
        %298 = vst [vmem:[%s296 + $0x10] sm:$0xf] %v294
        %v299 = vld [vmem:[%s1] sm:$0xff]
        %v300 = vld [vmem:[#allocation2] sm:$0xff]
        %v301 = vld [vmem:[#allocation2 + $0x8] sm:$0xff]
        %v302 = vld [vmem:[#allocation2 + $0x10] sm:$0xff]
        %306 = vrot.lane.b32.xlu0 %v300, 17
        %v307 = vpop.permute.xlu0 %306
        %308 = vrot.lane.b32.xlu0 %v301, 17
        %v309 = vpop.permute.xlu0 %308
        %310 = vrot.lane.b32.xlu0 %v302, 17
        %v311 = vpop.permute.xlu0 %310
        %vm312 = vcmask 138240
        %v313 = vsel %vm312, %v307, %v309
        %v314 = vsel %vm312, %v309, %v311
        %v317 = vsel %vm281, %v313, 0.0
        %v318 = vsel %vm282, %v314, 0.0
        %319 = vrot.lane.b32.xlu0 %v300, 15
        %v320 = vpop.permute.xlu0 %319
        %321 = vrot.lane.b32.xlu0 %v301, 15
        %v322 = vpop.permute.xlu0 %321
        %323 = vrot.lane.b32.xlu0 %v302, 15
        %v324 = vpop.permute.xlu0 %323
        %vm325 = vcmask 121856
        %v326 = vsel %vm325, %v320, %v322
        %v327 = vsel %vm325, %v322, %v324
        %v330 = vsel %vm283, %v326, 0.0
        %v331 = vsel %vm284, %v327, 0.0
        %332 = vrot.lane.b32.xlu0 %v300, 1
        %v333 = vpop.permute.xlu0 %332
        %334 = vrot.lane.b32.xlu0 %v301, 1
        %v335 = vpop.permute.xlu0 %334
        %336 = vrot.lane.b32.xlu0 %v302, 1
        %v337 = vpop.permute.xlu0 %336
        %vm338 = vcmask 7168
        %v339 = vsel %vm338, %v333, %v335
        %v340 = vsel %vm338, %v335, %v337
        %v343 = vsel %vm281, %v339, 0.0
        %v344 = vsel %vm282, %v340, 0.0
        %v345 = vld [vmem:[#allocation2 + $0x18] sm:$0xff]
        %347 = vrot.lane.b32.xlu0 %v301, 127
        %v348 = vpop.permute.xlu0 %347
        %349 = vrot.lane.b32.xlu0 %v302, 127
        %v350 = vpop.permute.xlu0 %349
        %351 = vrot.lane.b32.xlu0 %v345, 127
        %v352 = vpop.permute.xlu0 %351
        %vm353 = vcmask 1039360
        %v354 = vsel %vm353, %v348, %v350
        %v355 = vsel %vm353, %v350, %v352
        %v358 = vsel %vm283, %v354, 0.0
        %v359 = vsel %vm284, %v355, 0.0
        %360 = vrot.lane.b32.xlu0 %v301, 113
        %v361 = vpop.permute.xlu0 %360
        %362 = vrot.lane.b32.xlu0 %v302, 113
        %v363 = vpop.permute.xlu0 %362
        %364 = vrot.lane.b32.xlu0 %v345, 113
        %v365 = vpop.permute.xlu0 %364
        %vm366 = vcmask 924672
        %v367 = vsel %vm366, %v361, %v363
        %v368 = vsel %vm366, %v363, %v365
        %v371 = vsel %vm281, %v367, 0.0
        %v372 = vsel %vm282, %v368, 0.0
        %373 = vrot.lane.b32.xlu0 %v301, 111
        %v374 = vpop.permute.xlu0 %373
        %375 = vrot.lane.b32.xlu0 %v302, 111
        %v376 = vpop.permute.xlu0 %375
        %377 = vrot.lane.b32.xlu0 %v345, 111
        %v378 = vpop.permute.xlu0 %377
        %vm379 = vcmask 908288
        %v380 = vsel %vm379, %v374, %v376
        %v381 = vsel %vm379, %v376, %v378
        %v384 = vsel %vm283, %v380, 0.0
        %v385 = vsel %vm284, %v381, 0.0
        %386 = vrot.lane.b32.xlu0 %v300, 16
        %v387 = vpop.permute.xlu0 %386
        %388 = vrot.lane.b32.xlu0 %v301, 16
        %v389 = vpop.permute.xlu0 %388
        %390 = vrot.lane.b32.xlu0 %v302, 16
        %v391 = vpop.permute.xlu0 %390
        %vm392 = vcmask 130048
        %v393 = vsel %vm392, %v387, %v389
        %v394 = vsel %vm392, %v389, %v391
        %397 = vrot.lane.b32.xlu0 %v301, 112
        %v398 = vpop.permute.xlu0 %397
        %399 = vrot.lane.b32.xlu0 %v302, 112
        %v400 = vpop.permute.xlu0 %399
        %401 = vrot.lane.b32.xlu0 %v345, 112
        %v402 = vpop.permute.xlu0 %401
        %vm403 = vcmask 916480
        %v404 = vsel %vm403, %v398, %v400
        %v405 = vsel %vm403, %v400, %v402
        %v408 = vld [vmem:[%s296] sm:$0xff]
        %v409 = vld [vmem:[%s296 + $0x8] sm:$0xff]
        %v410 = vld [vmem:[%s296 + $0x10] sm:$0xff]
        %414 = vrot.lane.b32.xlu0 %v408, 17
        %v415 = vpop.permute.xlu0 %414
        %416 = vrot.lane.b32.xlu0 %v409, 17
        %v417 = vpop.permute.xlu0 %416
        %418 = vrot.lane.b32.xlu0 %v410, 17
        %v419 = vpop.permute.xlu0 %418
        %v420 = vsel %vm312, %v415, %v417
        %v421 = vsel %vm312, %v417, %v419
        %v424 = vsel %vm281, %v420, 0.0
        %v425 = vsel %vm282, %v421, 0.0
        %426 = vrot.lane.b32.xlu0 %v408, 15
        %v427 = vpop.permute.xlu0 %426
        %428 = vrot.lane.b32.xlu0 %v409, 15
        %v429 = vpop.permute.xlu0 %428
        %430 = vrot.lane.b32.xlu0 %v410, 15
        %v431 = vpop.permute.xlu0 %430
        %v432 = vsel %vm325, %v427, %v429
        %v433 = vsel %vm325, %v429, %v431
        %v436 = vsel %vm283, %v432, 0.0
        %v437 = vsel %vm284, %v433, 0.0
        %438 = vrot.lane.b32.xlu0 %v408, 1
        %v439 = vpop.permute.xlu0 %438
        %440 = vrot.lane.b32.xlu0 %v409, 1
        %v441 = vpop.permute.xlu0 %440
        %442 = vrot.lane.b32.xlu0 %v410, 1
        %v443 = vpop.permute.xlu0 %442
        %v444 = vsel %vm338, %v439, %v441
        %v445 = vsel %vm338, %v441, %v443
        %v448 = vsel %vm281, %v444, 0.0
        %v449 = vsel %vm282, %v445, 0.0
        %v450 = vld [vmem:[%s296 + $0x18] sm:$0xff]
        %452 = vrot.lane.b32.xlu0 %v409, 127
        %v453 = vpop.permute.xlu0 %452
        %454 = vrot.lane.b32.xlu0 %v410, 127
        %v455 = vpop.permute.xlu0 %454
        %456 = vrot.lane.b32.xlu0 %v450, 127
        %v457 = vpop.permute.xlu0 %456
        %v458 = vsel %vm353, %v453, %v455
        %v459 = vsel %vm353, %v455, %v457
        %v462 = vsel %vm283, %v458, 0.0
        %v463 = vsel %vm284, %v459, 0.0
        %464 = vrot.lane.b32.xlu0 %v409, 113
        %v465 = vpop.permute.xlu0 %464
        %466 = vrot.lane.b32.xlu0 %v410, 113
        %v467 = vpop.permute.xlu0 %466
        %468 = vrot.lane.b32.xlu0 %v450, 113
        %v469 = vpop.permute.xlu0 %468
        %v470 = vsel %vm366, %v465, %v467
        %v471 = vsel %vm366, %v467, %v469
        %v474 = vsel %vm281, %v470, 0.0
        %v475 = vsel %vm282, %v471, 0.0
        %476 = vrot.lane.b32.xlu0 %v409, 111
        %v477 = vpop.permute.xlu0 %476
        %478 = vrot.lane.b32.xlu0 %v410, 111
        %v479 = vpop.permute.xlu0 %478
        %480 = vrot.lane.b32.xlu0 %v450, 111
        %v481 = vpop.permute.xlu0 %480
        %v482 = vsel %vm379, %v477, %v479
        %v483 = vsel %vm379, %v479, %v481
        %v486 = vsel %vm283, %v482, 0.0
        %v487 = vsel %vm284, %v483, 0.0
        %488 = vrot.lane.b32.xlu0 %v408, 16
        %v489 = vpop.permute.xlu0 %488
        %490 = vrot.lane.b32.xlu0 %v409, 16
        %v491 = vpop.permute.xlu0 %490
        %492 = vrot.lane.b32.xlu0 %v410, 16
        %v493 = vpop.permute.xlu0 %492
        %v494 = vsel %vm392, %v489, %v491
        %v495 = vsel %vm392, %v491, %v493
        %498 = vrot.lane.b32.xlu0 %v409, 112
        %v499 = vpop.permute.xlu0 %498
        %500 = vrot.lane.b32.xlu0 %v410, 112
        %v501 = vpop.permute.xlu0 %500
        %502 = vrot.lane.b32.xlu0 %v450, 112
        %v503 = vpop.permute.xlu0 %502
        %v504 = vsel %vm403, %v499, %v501
        %v505 = vsel %vm403, %v501, %v503
        %v508 = vld [vmem:[%s2] sm:$0xff]
        %510 = vset.pattern.permute.xlu0 0
        %511 = vperm.xlu0 %510, %v508
        %v512 = vpop.permute.xlu0 %511
        %vm514 = vcmask 588800
        %v516 = vsel %vm514, %v299, 0
        %518 = vmatprep.subr.mxu0 %v318
        %519 = vmatpush1.msra.mxu0 %v317
        %520 = vmatprep.subr.mxu0 %v394
        %521 = vmatpush1.msra.mxu0 %v393
        %522 = vmatprep.subr.mxu0 %v331
        %523 = vmatpush1.msra.mxu0 %v330
        %524 = vmatprep.subr.mxu0 %v344
        %525 = vmatpush1.msra.mxu0 %v343
        %526 = vmatprep.subr.mxu0 %v302
        %527 = vmatpush1.msra.mxu0 %v301
        %528 = vmatprep.subr.mxu0 %v359
        %529 = vmatpush1.msra.mxu0 %v358
        %530 = vmatprep.subr.mxu0 %v372
        %531 = vmatpush1.msra.mxu0 %v371
        %532 = vmatprep.subr.mxu0 %v405
        %533 = vmatpush1.msra.mxu0 %v404
        %534 = vmatprep.subr.mxu0 %v385
        %535 = vmatpush1.msra.mxu0 %v384
        %536 = vmatprep.subr.mxu0 0.0
        %537 = vmatpush1.msra.mxu0 0.0
        %538 = vmatprep.subr.mxu0 0.0
        %539 = vmatpush1.msra.mxu0 0.0
        %540 = vmatprep.subr.mxu0 0.0
        %541 = vmatpush1.msra.mxu0 0.0
        %542 = vmatprep.subr.mxu0 0.0
        %543 = vmatpush1.msra.mxu0 0.0
        %544 = vmatprep.subr.mxu0 0.0
        %545 = vmatpush1.msra.mxu0 0.0
        %546 = vmatprep.subr.mxu0 0.0
        %547 = vmatpush1.msra.mxu0 0.0
        %548 = vmatprep.subr.mxu0 0.0
        %549 = vmatpush1.msra.mxu0 0.0
        %550 = vmatprep.subr.mxu0 0.0
        %551 = vmatpush1.msra.mxu0 0.0
        %552 = vmatprep.subr.mxu0 0.0
        %553 = vmatpush1.msra.mxu0 0.0
        %554 = vmatprep.subr.mxu0 0.0
        %555 = vmatpush1.msra.mxu0 0.0
        %556 = vmatprep.subr.mxu0 0.0
        %557 = vmatpush1.msra.mxu0 0.0
        %558 = vmatprep.subr.mxu0 0.0
        %559 = vmatpush1.msra.mxu0 0.0
        %560 = vmatprep.subr.mxu0 0.0
        %561 = vmatpush1.msra.mxu0 0.0
        %562 = vmatprep.subr.mxu0 0.0
        %563 = vmatpush1.msra.mxu0 0.0
        %564 = vmatprep.subr.mxu0 0.0
        %565 = vmatpush1.msra.mxu0 0.0
        %566 = vmatprep.subr.mxu0 0.0
        %567 = vmatpush1.msra.mxu0 0.0
        %568 = vmatprep.subr.mxu0 0.0
        %569 = vmatpush1.msra.mxu0 0.0
        %570 = vmatprep.subr.mxu0 0.0
        %571 = vmatpush1.msra.mxu0 0.0
        %572 = vmatprep.subr.mxu0 0.0
        %573 = vmatpush1.msra.mxu0 0.0
        %574 = vmatprep.subr.mxu0 0.0
        %575 = vmatpush1.msra.mxu0 0.0
        %576 = vmatprep.subr.mxu0 0.0
        %577 = vmatpush1.msra.mxu0 0.0
        %578 = vmatprep.subr.mxu0 0.0
        %579 = vmatpush1.msra.mxu0 0.0
        %580 = vmatprep.subr.mxu0 0.0
        %581 = vmatpush1.msra.mxu0 0.0
        %582 = vmatprep.mubr.f32.mxu0 0.0
        %583 = vmatmul.mubr.f32.gmra.mrb[0].mxu0 %v516
        %v584 = vpop.f32.mrb[0].mxu0
        %v585 = vadd.f32 %v512, %v584
        %v586 = vpop.f32.mrb[0].mxu0
        %v587 = vadd.f32 %v512, %v586
        %588 = vdwg.mxu0
        %589 = vmatprep.subr.mxu0 %v425
        %590 = vmatpush1.msra.mxu0 %v424
        %591 = vmatprep.subr.mxu0 %v495
        %592 = vmatpush1.msra.mxu0 %v494
        %593 = vmatprep.subr.mxu0 %v437
        %594 = vmatpush1.msra.mxu0 %v436
        %595 = vmatprep.subr.mxu0 %v449
        %596 = vmatpush1.msra.mxu0 %v448
        %597 = vmatprep.subr.mxu0 %v410
        %598 = vmatpush1.msra.mxu0 %v409
        %599 = vmatprep.subr.mxu0 %v463
        %600 = vmatpush1.msra.mxu0 %v462
        %601 = vmatprep.subr.mxu0 %v475
        %602 = vmatpush1.msra.mxu0 %v474
        %603 = vmatprep.subr.mxu0 %v505
        %604 = vmatpush1.msra.mxu0 %v504
        %605 = vmatprep.subr.mxu0 %v487
        %606 = vmatpush1.msra.mxu0 %v486
        %607 = vmatprep.subr.mxu0 0.0
        %608 = vmatpush1.msra.mxu0 0.0
        %609 = vmatprep.subr.mxu0 0.0
        %610 = vmatpush1.msra.mxu0 0.0
        %611 = vmatprep.subr.mxu0 0.0
        %612 = vmatpush1.msra.mxu0 0.0
        %613 = vmatprep.subr.mxu0 0.0
        %614 = vmatpush1.msra.mxu0 0.0
        %615 = vmatprep.subr.mxu0 0.0
        %616 = vmatpush1.msra.mxu0 0.0
        %617 = vmatprep.subr.mxu0 0.0
        %618 = vmatpush1.msra.mxu0 0.0
        %619 = vmatprep.subr.mxu0 0.0
        %620 = vmatpush1.msra.mxu0 0.0
        %621 = vmatprep.subr.mxu0 0.0
        %622 = vmatpush1.msra.mxu0 0.0
        %623 = vmatprep.subr.mxu0 0.0
        %624 = vmatpush1.msra.mxu0 0.0
        %625 = vmatprep.subr.mxu0 0.0
        %626 = vmatpush1.msra.mxu0 0.0
        %627 = vmatprep.subr.mxu0 0.0
        %628 = vmatpush1.msra.mxu0 0.0
        %629 = vmatprep.subr.mxu0 0.0
        %630 = vmatpush1.msra.mxu0 0.0
        %631 = vmatprep.subr.mxu0 0.0
        %632 = vmatpush1.msra.mxu0 0.0
        %633 = vmatprep.subr.mxu0 0.0
        %634 = vmatpush1.msra.mxu0 0.0
        %635 = vmatprep.subr.mxu0 0.0
        %636 = vmatpush1.msra.mxu0 0.0
        %637 = vmatprep.subr.mxu0 0.0
        %638 = vmatpush1.msra.mxu0 0.0
        %639 = vmatprep.subr.mxu0 0.0
        %640 = vmatpush1.msra.mxu0 0.0
        %641 = vmatprep.subr.mxu0 0.0
        %642 = vmatpush1.msra.mxu0 0.0
        %643 = vmatprep.subr.mxu0 0.0
        %644 = vmatpush1.msra.mxu0 0.0
        %645 = vmatprep.subr.mxu0 0.0
        %646 = vmatpush1.msra.mxu0 0.0
        %647 = vmatprep.subr.mxu0 0.0
        %648 = vmatpush1.msra.mxu0 0.0
        %649 = vmatprep.subr.mxu0 0.0
        %650 = vmatpush1.msra.mxu0 0.0
        %651 = vmatprep.subr.mxu0 0.0
        %652 = vmatpush1.msra.mxu0 0.0
        %653 = vmatprep.mubr.f32.mxu0 0.0
        %654 = vmatmul.mubr.f32.gmra.mrb[0].mxu0 %v516
        %v655 = vpop.f32.mrb[0].mxu0
        %v656 = vadd.f32 %v512, %v655
        %v657 = vpop.f32.mrb[0].mxu0
        %v658 = vadd.f32 %v512, %v657
        %659 = vdwg.mxu0
        %v660 = vxor.u32 %v585, 2147483648
        %v661 = vxor.u32 %v587, 2147483648
        %v662 = vxor.u32 %v656, 2147483648
        %v663 = vxor.u32 %v658, 2147483648
        %v664 = vmul.f32 %v660, 1.442695
        %v665 = vpow.pop %v664
        %v666 = vmul.f32 %v661, 1.442695
        %v667 = vpow.pop %v666
        %v668 = vmul.f32 %v662, 1.442695
        %v669 = vpow.pop %v668
        %v670 = vmul.f32 %v663, 1.442695
        %v671 = vpow.pop %v670
        %v672 = vadd.f32 %v665, 1.0
        %v673 = vadd.f32 %v667, 1.0
        %v674 = vadd.f32 %v669, 1.0
        %v675 = vadd.f32 %v671, 1.0
        %v676 = vrcp.pop %v672
        %v677 = vmul.f32 1.0, %v676
        %v678 = vrcp.pop %v673
        %v679 = vmul.f32 1.0, %v678
        %v680 = vrcp.pop %v674
        %v681 = vmul.f32 1.0, %v680
        %v682 = vrcp.pop %v675
        %v683 = vmul.f32 1.0, %v682
        %v684 = vmul.f32 %v585, %v677
        %v685 = vmul.f32 %v587, %v679
        %v686 = vmul.f32 %v656, %v681
        %v687 = vmul.f32 %v658, %v683
        %688 = vst [vmem:[#allocation2 + $0x8] sm:$0xff] %v684
        %689 = vst [vmem:[#allocation2 + $0x10] sm:$0xff] %v685
        %690 = vst [vmem:[%s296 + $0x8] sm:$0xff] %v686
        %691 = vst [vmem:[%s296 + $0x10] sm:$0xff] %v687
        %v692 = vld [vmem:[%s3] sm:$0xff]
        %v693 = vld [vmem:[#allocation2] sm:$0xff]
        %v694 = vld [vmem:[#allocation2 + $0x8] sm:$0xff]
        %v695 = vld [vmem:[#allocation2 + $0x10] sm:$0xff]
        %699 = vrot.lane.b32.xlu0 %v693, 17
        %v700 = vpop.permute.xlu0 %699
        %701 = vrot.lane.b32.xlu0 %v694, 17
        %v702 = vpop.permute.xlu0 %701
        %703 = vrot.lane.b32.xlu0 %v695, 17
        %v704 = vpop.permute.xlu0 %703
        %v705 = vsel %vm312, %v700, %v702
        %v706 = vsel %vm312, %v702, %v704
        %v709 = vsel %vm281, %v705, 0.0
        %v710 = vsel %vm282, %v706, 0.0
        %711 = vrot.lane.b32.xlu0 %v693, 15
        %v712 = vpop.permute.xlu0 %711
        %713 = vrot.lane.b32.xlu0 %v694, 15
        %v714 = vpop.permute.xlu0 %713
        %715 = vrot.lane.b32.xlu0 %v695, 15
        %v716 = vpop.permute.xlu0 %715
        %v717 = vsel %vm325, %v712, %v714
        %v718 = vsel %vm325, %v714, %v716
        %v721 = vsel %vm283, %v717, 0.0
        %v722 = vsel %vm284, %v718, 0.0
        %723 = vrot.lane.b32.xlu0 %v693, 1
        %v724 = vpop.permute.xlu0 %723
        %725 = vrot.lane.b32.xlu0 %v694, 1
        %v726 = vpop.permute.xlu0 %725
        %727 = vrot.lane.b32.xlu0 %v695, 1
        %v728 = vpop.permute.xlu0 %727
        %v729 = vsel %vm338, %v724, %v726
        %v730 = vsel %vm338, %v726, %v728
        %v733 = vsel %vm281, %v729, 0.0
        %v734 = vsel %vm282, %v730, 0.0
        %v735 = vld [vmem:[#allocation2 + $0x18] sm:$0xff]
        %737 = vrot.lane.b32.xlu0 %v694, 127
        %v738 = vpop.permute.xlu0 %737
        %739 = vrot.lane.b32.xlu0 %v695, 127
        %v740 = vpop.permute.xlu0 %739
        %741 = vrot.lane.b32.xlu0 %v735, 127
        %v742 = vpop.permute.xlu0 %741
        %v743 = vsel %vm353, %v738, %v740
        %v744 = vsel %vm353, %v740, %v742
        %v747 = vsel %vm283, %v743, 0.0
        %v748 = vsel %vm284, %v744, 0.0
        %749 = vrot.lane.b32.xlu0 %v694, 113
        %v750 = vpop.permute.xlu0 %749
        %751 = vrot.lane.b32.xlu0 %v695, 113
        %v752 = vpop.permute.xlu0 %751
        %753 = vrot.lane.b32.xlu0 %v735, 113
        %v754 = vpop.permute.xlu0 %753
        %v755 = vsel %vm366, %v750, %v752
        %v756 = vsel %vm366, %v752, %v754
        %v759 = vsel %vm281, %v755, 0.0
        %v760 = vsel %vm282, %v756, 0.0
        %761 = vrot.lane.b32.xlu0 %v694, 111
        %v762 = vpop.permute.xlu0 %761
        %763 = vrot.lane.b32.xlu0 %v695, 111
        %v764 = vpop.permute.xlu0 %763
        %765 = vrot.lane.b32.xlu0 %v735, 111
        %v766 = vpop.permute.xlu0 %765
        %v767 = vsel %vm379, %v762, %v764
        %v768 = vsel %vm379, %v764, %v766
        %v771 = vsel %vm283, %v767, 0.0
        %v772 = vsel %vm284, %v768, 0.0
        %773 = vrot.lane.b32.xlu0 %v693, 16
        %v774 = vpop.permute.xlu0 %773
        %775 = vrot.lane.b32.xlu0 %v694, 16
        %v776 = vpop.permute.xlu0 %775
        %777 = vrot.lane.b32.xlu0 %v695, 16
        %v778 = vpop.permute.xlu0 %777
        %v779 = vsel %vm392, %v774, %v776
        %v780 = vsel %vm392, %v776, %v778
        %783 = vrot.lane.b32.xlu0 %v694, 112
        %v784 = vpop.permute.xlu0 %783
        %785 = vrot.lane.b32.xlu0 %v695, 112
        %v786 = vpop.permute.xlu0 %785
        %787 = vrot.lane.b32.xlu0 %v735, 112
        %v788 = vpop.permute.xlu0 %787
        %v789 = vsel %vm403, %v784, %v786
        %v790 = vsel %vm403, %v786, %v788
        %v793 = vld [vmem:[%s296] sm:$0xff]
        %v794 = vld [vmem:[%s296 + $0x8] sm:$0xff]
        %v795 = vld [vmem:[%s296 + $0x10] sm:$0xff]
        %799 = vrot.lane.b32.xlu0 %v793, 17
        %v800 = vpop.permute.xlu0 %799
        %801 = vrot.lane.b32.xlu0 %v794, 17
        %v802 = vpop.permute.xlu0 %801
        %803 = vrot.lane.b32.xlu0 %v795, 17
        %v804 = vpop.permute.xlu0 %803
        %v805 = vsel %vm312, %v800, %v802
        %v806 = vsel %vm312, %v802, %v804
        %v809 = vsel %vm281, %v805, 0.0
        %v810 = vsel %vm282, %v806, 0.0
        %811 = vrot.lane.b32.xlu0 %v793, 15
        %v812 = vpop.permute.xlu0 %811
        %813 = vrot.lane.b32.xlu0 %v794, 15
        %v814 = vpop.permute.xlu0 %813
        %815 = vrot.lane.b32.xlu0 %v795, 15
        %v816 = vpop.permute.xlu0 %815
        %v817 = vsel %vm325, %v812, %v814
        %v818 = vsel %vm325, %v814, %v816
        %v821 = vsel %vm283, %v817, 0.0
        %v822 = vsel %vm284, %v818, 0.0
        %823 = vrot.lane.b32.xlu0 %v793, 1
        %v824 = vpop.permute.xlu0 %823
        %825 = vrot.lane.b32.xlu0 %v794, 1
        %v826 = vpop.permute.xlu0 %825
        %827 = vrot.lane.b32.xlu0 %v795, 1
        %v828 = vpop.permute.xlu0 %827
        %v829 = vsel %vm338, %v824, %v826
        %v830 = vsel %vm338, %v826, %v828
        %v833 = vsel %vm281, %v829, 0.0
        %v834 = vsel %vm282, %v830, 0.0
        %v835 = vld [vmem:[%s296 + $0x18] sm:$0xff]
        %837 = vrot.lane.b32.xlu0 %v794, 127
        %v838 = vpop.permute.xlu0 %837
        %839 = vrot.lane.b32.xlu0 %v795, 127
        %v840 = vpop.permute.xlu0 %839
        %841 = vrot.lane.b32.xlu0 %v835, 127
        %v842 = vpop.permute.xlu0 %841
        %v843 = vsel %vm353, %v838, %v840
        %v844 = vsel %vm353, %v840, %v842
        %v847 = vsel %vm283, %v843, 0.0
        %v848 = vsel %vm284, %v844, 0.0
        %849 = vrot.lane.b32.xlu0 %v794, 113
        %v850 = vpop.permute.xlu0 %849
        %851 = vrot.lane.b32.xlu0 %v795, 113
        %v852 = vpop.permute.xlu0 %851
        %853 = vrot.lane.b32.xlu0 %v835, 113
        %v854 = vpop.permute.xlu0 %853
        %v855 = vsel %vm366, %v850, %v852
        %v856 = vsel %vm366, %v852, %v854
        %v859 = vsel %vm281, %v855, 0.0
        %v860 = vsel %vm282, %v856, 0.0
        %861 = vrot.lane.b32.xlu0 %v794, 111
        %v862 = vpop.permute.xlu0 %861
        %863 = vrot.lane.b32.xlu0 %v795, 111
        %v864 = vpop.permute.xlu0 %863
        %865 = vrot.lane.b32.xlu0 %v835, 111
        %v866 = vpop.permute.xlu0 %865
        %v867 = vsel %vm379, %v862, %v864
        %v868 = vsel %vm379, %v864, %v866
        %v871 = vsel %vm283, %v867, 0.0
        %v872 = vsel %vm284, %v868, 0.0
        %873 = vrot.lane.b32.xlu0 %v793, 16
        %v874 = vpop.permute.xlu0 %873
        %875 = vrot.lane.b32.xlu0 %v794, 16
        %v876 = vpop.permute.xlu0 %875
        %877 = vrot.lane.b32.xlu0 %v795, 16
        %v878 = vpop.permute.xlu0 %877
        %v879 = vsel %vm392, %v874, %v876
        %v880 = vsel %vm392, %v876, %v878
        %883 = vrot.lane.b32.xlu0 %v794, 112
        %v884 = vpop.permute.xlu0 %883
        %885 = vrot.lane.b32.xlu0 %v795, 112
        %v886 = vpop.permute.xlu0 %885
        %887 = vrot.lane.b32.xlu0 %v835, 112
        %v888 = vpop.permute.xlu0 %887
        %v889 = vsel %vm403, %v884, %v886
        %v890 = vsel %vm403, %v886, %v888
        %v893 = vld [vmem:[%s4] sm:$0xff]
        %895 = vset.pattern.permute.xlu0 0
        %896 = vperm.xlu0 %895, %v893
        %v897 = vpop.permute.xlu0 %896
        %v900 = vsel %vm514, %v692, 0
        %902 = vmatprep.subr.mxu0 %v710
        %903 = vmatpush1.msra.mxu0 %v709
        %904 = vmatprep.subr.mxu0 %v780
        %905 = vmatpush1.msra.mxu0 %v779
        %906 = vmatprep.subr.mxu0 %v722
        %907 = vmatpush1.msra.mxu0 %v721
        %908 = vmatprep.subr.mxu0 %v734
        %909 = vmatpush1.msra.mxu0 %v733
        %910 = vmatprep.subr.mxu0 %v695
        %911 = vmatpush1.msra.mxu0 %v694
        %912 = vmatprep.subr.mxu0 %v748
        %913 = vmatpush1.msra.mxu0 %v747
        %914 = vmatprep.subr.mxu0 %v760
        %915 = vmatpush1.msra.mxu0 %v759
        %916 = vmatprep.subr.mxu0 %v790
        %917 = vmatpush1.msra.mxu0 %v789
        %918 = vmatprep.subr.mxu0 %v772
        %919 = vmatpush1.msra.mxu0 %v771
        %920 = vmatprep.subr.mxu0 0.0
        %921 = vmatpush1.msra.mxu0 0.0
        %922 = vmatprep.subr.mxu0 0.0
        %923 = vmatpush1.msra.mxu0 0.0
        %924 = vmatprep.subr.mxu0 0.0
        %925 = vmatpush1.msra.mxu0 0.0
        %926 = vmatprep.subr.mxu0 0.0
        %927 = vmatpush1.msra.mxu0 0.0
        %928 = vmatprep.subr.mxu0 0.0
        %929 = vmatpush1.msra.mxu0 0.0
        %930 = vmatprep.subr.mxu0 0.0
        %931 = vmatpush1.msra.mxu0 0.0
        %932 = vmatprep.subr.mxu0 0.0
        %933 = vmatpush1.msra.mxu0 0.0
        %934 = vmatprep.subr.mxu0 0.0
        %935 = vmatpush1.msra.mxu0 0.0
        %936 = vmatprep.subr.mxu0 0.0
        %937 = vmatpush1.msra.mxu0 0.0
        %938 = vmatprep.subr.mxu0 0.0
        %939 = vmatpush1.msra.mxu0 0.0
        %940 = vmatprep.subr.mxu0 0.0
        %941 = vmatpush1.msra.mxu0 0.0
        %942 = vmatprep.subr.mxu0 0.0
        %943 = vmatpush1.msra.mxu0 0.0
        %944 = vmatprep.subr.mxu0 0.0
        %945 = vmatpush1.msra.mxu0 0.0
        %946 = vmatprep.subr.mxu0 0.0
        %947 = vmatpush1.msra.mxu0 0.0
        %948 = vmatprep.subr.mxu0 0.0
        %949 = vmatpush1.msra.mxu0 0.0
        %950 = vmatprep.subr.mxu0 0.0
        %951 = vmatpush1.msra.mxu0 0.0
        %952 = vmatprep.subr.mxu0 0.0
        %953 = vmatpush1.msra.mxu0 0.0
        %954 = vmatprep.subr.mxu0 0.0
        %955 = vmatpush1.msra.mxu0 0.0
        %956 = vmatprep.subr.mxu0 0.0
        %957 = vmatpush1.msra.mxu0 0.0
        %958 = vmatprep.subr.mxu0 0.0
        %959 = vmatpush1.msra.mxu0 0.0
        %960 = vmatprep.subr.mxu0 0.0
        %961 = vmatpush1.msra.mxu0 0.0
        %962 = vmatprep.subr.mxu0 0.0
        %963 = vmatpush1.msra.mxu0 0.0
        %964 = vmatprep.subr.mxu0 0.0
        %965 = vmatpush1.msra.mxu0 0.0
        %966 = vmatprep.mubr.f32.mxu0 0.0
        %967 = vmatmul.mubr.f32.gmra.mrb[0].mxu0 %v900
        %v968 = vpop.f32.mrb[0].mxu0
        %v969 = vadd.f32 %v897, %v968
        %v970 = vpop.f32.mrb[0].mxu0
        %v971 = vadd.f32 %v897, %v970
        %972 = vdwg.mxu0
        %973 = vmatprep.subr.mxu0 %v810
        %974 = vmatpush1.msra.mxu0 %v809
        %975 = vmatprep.subr.mxu0 %v880
        %976 = vmatpush1.msra.mxu0 %v879
        %977 = vmatprep.subr.mxu0 %v822
        %978 = vmatpush1.msra.mxu0 %v821
        %979 = vmatprep.subr.mxu0 %v834
        %980 = vmatpush1.msra.mxu0 %v833
        %981 = vmatprep.subr.mxu0 %v795
        %982 = vmatpush1.msra.mxu0 %v794
        %983 = vmatprep.subr.mxu0 %v848
        %984 = vmatpush1.msra.mxu0 %v847
        %985 = vmatprep.subr.mxu0 %v860
        %986 = vmatpush1.msra.mxu0 %v859
        %987 = vmatprep.subr.mxu0 %v890
        %988 = vmatpush1.msra.mxu0 %v889
        %989 = vmatprep.subr.mxu0 %v872
        %990 = vmatpush1.msra.mxu0 %v871
        %991 = vmatprep.subr.mxu0 0.0
        %992 = vmatpush1.msra.mxu0 0.0
        %993 = vmatprep.subr.mxu0 0.0
        %994 = vmatpush1.msra.mxu0 0.0
        %995 = vmatprep.subr.mxu0 0.0
        %996 = vmatpush1.msra.mxu0 0.0
        %997 = vmatprep.subr.mxu0 0.0
        %998 = vmatpush1.msra.mxu0 0.0
        %999 = vmatprep.subr.mxu0 0.0
        %1000 = vmatpush1.msra.mxu0 0.0
        %1001 = vmatprep.subr.mxu0 0.0
        %1002 = vmatpush1.msra.mxu0 0.0
        %1003 = vmatprep.subr.mxu0 0.0
        %1004 = vmatpush1.msra.mxu0 0.0
        %1005 = vmatprep.subr.mxu0 0.0
        %1006 = vmatpush1.msra.mxu0 0.0
        %1007 = vmatprep.subr.mxu0 0.0
        %1008 = vmatpush1.msra.mxu0 0.0
        %1009 = vmatprep.subr.mxu0 0.0
        %1010 = vmatpush1.msra.mxu0 0.0
        %1011 = vmatprep.subr.mxu0 0.0
        %1012 = vmatpush1.msra.mxu0 0.0
        %1013 = vmatprep.subr.mxu0 0.0
        %1014 = vmatpush1.msra.mxu0 0.0
        %1015 = vmatprep.subr.mxu0 0.0
        %1016 = vmatpush1.msra.mxu0 0.0
        %1017 = vmatprep.subr.mxu0 0.0
        %1018 = vmatpush1.msra.mxu0 0.0
        %1019 = vmatprep.subr.mxu0 0.0
        %1020 = vmatpush1.msra.mxu0 0.0
        %1021 = vmatprep.subr.mxu0 0.0
        %1022 = vmatpush1.msra.mxu0 0.0
        %1023 = vmatprep.subr.mxu0 0.0
        %1024 = vmatpush1.msra.mxu0 0.0
        %1025 = vmatprep.subr.mxu0 0.0
        %1026 = vmatpush1.msra.mxu0 0.0
        %1027 = vmatprep.subr.mxu0 0.0
        %1028 = vmatpush1.msra.mxu0 0.0
        %1029 = vmatprep.subr.mxu0 0.0
        %1030 = vmatpush1.msra.mxu0 0.0
        %1031 = vmatprep.subr.mxu0 0.0
        %1032 = vmatpush1.msra.mxu0 0.0
        %1033 = vmatprep.subr.mxu0 0.0
        %1034 = vmatpush1.msra.mxu0 0.0
        %1035 = vmatprep.subr.mxu0 0.0
        %1036 = vmatpush1.msra.mxu0 0.0
        %1037 = vmatprep.mubr.f32.mxu0 0.0
        %1038 = vmatmul.mubr.f32.gmra.mrb[0].mxu0 %v900
        %v1039 = vpop.f32.mrb[0].mxu0
        %v1040 = vadd.f32 %v897, %v1039
        %v1041 = vpop.f32.mrb[0].mxu0
        %v1042 = vadd.f32 %v897, %v1041
        %1043 = vdwg.mxu0
        %v1044 = vld [vmem:[%s217] sm:$0xff]
        %v1046 = vcombine.high %v1044, %v1044
        %v1048 = vadd.f32 %v969, %v1044
        %v1049 = vadd.f32 %v971, %v1046
        %v1050 = vxor.u32 %v1048, 2147483648
        %v1051 = vxor.u32 %v1049, 2147483648
        %v1052 = vmul.f32 %v1050, 1.442695
        %v1053 = vpow.pop %v1052
        %v1054 = vmul.f32 %v1051, 1.442695
        %v1055 = vpow.pop %v1054
        %v1056 = vadd.f32 %v1053, 1.0
        %v1057 = vadd.f32 %v1055, 1.0
        %v1058 = vrcp.pop %v1056
        %v1059 = vmul.f32 1.0, %v1058
        %v1060 = vrcp.pop %v1057
        %v1061 = vmul.f32 1.0, %v1060
        %v1062 = vmul.f32 %v1048, %v1059
        %v1063 = vmul.f32 %v1049, %v1061
        %v1066 = vcombine.low %v1062, %v1063
        %1068 = vst [vmem:[%s243] sm:$0xff] %v1066
        %v1069 = vld [vmem:[%s291] sm:$0xff]
        %v1071 = vcombine.high %v1069, %v1069
        %v1073 = vadd.f32 %v1040, %v1069
        %v1074 = vadd.f32 %v1042, %v1071
        %v1075 = vxor.u32 %v1073, 2147483648
        %v1076 = vxor.u32 %v1074, 2147483648
        %v1077 = vmul.f32 %v1075, 1.442695
        %v1078 = vpow.pop %v1077
        %v1079 = vmul.f32 %v1076, 1.442695
        %v1080 = vpow.pop %v1079
        %v1081 = vadd.f32 %v1078, 1.0
        %v1082 = vadd.f32 %v1080, 1.0
        %v1083 = vrcp.pop %v1081
        %v1084 = vmul.f32 1.0, %v1083
        %v1085 = vrcp.pop %v1082
        %v1086 = vmul.f32 1.0, %v1085
        %v1087 = vmul.f32 %v1073, %v1084
        %v1088 = vmul.f32 %v1074, %v1086
        %v1091 = vcombine.low %v1087, %v1088
        %s1093 = scalar_lea.vmem %s243, 8 [#allocation6]
        %1094 = vst [vmem:[%s1093] sm:$0xff] %v1091
        %s1095 = sand.u32 %s140, 1
        %s1096 = scalar_lea.sflag [#allocation5], %s1095
        %s1097 = sand.u32 %s140, 1
        %s1098 = smul.addr %s1097, 16
        %s1099 = scalar_lea.vmem [#allocation6], %s1098
        // Predicated region
        $region45: #{tpu_custom_call.1} parent=39 // pred_check
          %p1100 = pneg %p150
        $region46: #{tpu_custom_call.1} parent=39 // pred_check_branch
          %1102 = sbr.rel (%p1100) target = $region48
        $region47: #{tpu_custom_call.1} parent=39 // pred_region
          %s1103 = smul.u32 2, %s22
          %s1105 = ssub.s32 256, 256
          %1106 = vsyncadd %s1096, %s1105
          %s1107 = smul.addr %s1103, 2
          %s1108 = smul.addr %s1107, 64
          %s1109 = scalar_lea.hbm %s5, %s1108
          %s1110 = sshll.u32 %s1099, 4
          %s1111 = int_to_ptr.vmem [resolvable:$true] %s1110
          %1116 = dma.vmem_to_hbm [thread:$0]  %s1111, 256, %s1109, %s1096, 128, 128, 8
        $region48: #{tpu_custom_call.1} parent=39 // pred_fallthru
          _
      $region40: #{tpu_custom_call.1} parent=5 // pred_fallthru
        _
      %p1117 = scmp.le.s32.totalorder 2, %s17
      // Predicated region
      $region49: #{tpu_custom_call.1} parent=5 // pred_check
        %p1118 = pneg %p1117
      $region50: #{tpu_custom_call.1} parent=5 // pred_check_branch
        %1120 = sbr.rel (%p1118) target = $region52
      $region51: #{tpu_custom_call.1} parent=5 // pred_region
        %s1121 = ssub.s32 %s17, 2
        // Predicated region
        $region53: #{tpu_custom_call.1} parent=51 // pred_check
          %p1122 = pneg %p156
        $region54: #{tpu_custom_call.1} parent=51 // pred_check_branch
          %1124 = sbr.rel (%p1122) target = $region56
        $region55: #{tpu_custom_call.1} parent=51 // pred_region
          %s1125 = sand.u32 %s141, 1
          %s1126 = scalar_lea.sflag [#allocation5], %s1125
          %s1127 = sand.u32 %s141, 1
          %s1128 = smul.addr %s1127, 16
          %s1129 = scalar_lea.vmem [#allocation6], %s1128
          %1130 = dma.done %s1126, 256
        $region56: #{tpu_custom_call.1} parent=51 // pred_fallthru
          _
      $region52: #{tpu_custom_call.1} parent=5 // pred_fallthru
        _
    $region6: #{tpu_custom_call.1} parent=1 // loop_footer
      %s21 = sadd.s32 1, %s17
    $region7: #{tpu_custom_call.1} parent=1 // loop_footer_branch
      %16 = sbr.rel target = $region3
    $region8: #{tpu_custom_call.1} parent=1 // loop_exit
      _
    %1131 = vsyncpa [#allocation4], 1
    %s1132 = scalar_lea.sflag [#allocation4], 1
    %1133 = vsyncpa %s1132, 1
    %1134 = vsyncpa [#allocation5], 1
    %s1135 = scalar_lea.sflag [#allocation5], 1
    %1136 = vsyncpa %s1135, 1

</llo_original>
